<compile_context>
chip_gen: v7x
topology: tpu7x:2x2x1
jax: 0.10.0
libtpu: 0.0.40
codegen_flags: <defaults>
</compile_context>

<pallas_src>
import jax
import jax.numpy as jnp
from jax.experimental import pallas as pl
from jax.experimental.pallas import tpu as pltpu

LANE = 128     # TPU lane width: pad feature dims to multiples of this
SUBLANE = 8    # sublane granularity for the batch tile


def _round_up(n, m):
    return ((n + m - 1) // m) * m


def _pad2(a, rows, cols):
    r, c = a.shape
    return jnp.pad(a, ((0, rows - r), (0, cols - c)))


def mlp_kernel(x_ref, w1_ref, b1_ref, w2_ref, b2_ref, w3_ref, b3_ref,
               o_ref, h1_ref, h2_ref):
    """relu(x@W1+b1) -> relu(.@W2+b2) -> .@W3+b3 ; bf16 MXU inputs, f32 epilogues."""
    # Hoist bias reads once (JAX does not CSE broadcasts).
    b1 = b1_ref[...]
    b2 = b2_ref[...]
    b3 = b3_ref[...]

    # layer1: Linear + ReLU (f32 accumulate + f32 epilogue)
    h1 = jnp.dot(x_ref[...], w1_ref[...], preferred_element_type=jnp.float32)
    h1_ref[...] = jnp.maximum(h1 + b1, 0.0)

    # layer2: Linear + ReLU (re-cast to bf16 only at the MXU input)
    h2 = jnp.dot(h1_ref[...].astype(jnp.bfloat16), w2_ref[...],
                 preferred_element_type=jnp.float32)
    h2_ref[...] = jnp.maximum(h2 + b2, 0.0)

    # layer3: Linear (no activation)
    out = jnp.dot(h2_ref[...].astype(jnp.bfloat16), w3_ref[...],
                  preferred_element_type=jnp.float32)
    o_ref[...] = (out + b3).astype(o_ref.dtype)


def activation_net_forward(x, params, *, batch_tile=256):
    """3-layer MLP forward (Activation_Net) with a single Pallas TPU kernel.

    x: (B, in_dim) float32.
    params: w1 (in,h1), b1 (1,h1), w2 (h1,h2), b2 (1,h2), w3 (h2,out), b3 (1,out),
            all float32; weights are PyTorch nn.Linear weights pre-transposed to
            (in_features, out_features).
    """
    w1, b1 = params["w1"], params["b1"]
    w2, b2 = params["w2"], params["b2"]
    w3, b3 = params["w3"], params["b3"]

    B, in_dim = x.shape
    h1_dim, h2_dim, out_dim = w1.shape[1], w2.shape[1], w3.shape[1]

    # --- Pad feature dims to lane multiples (zero padding => exact result). ---
    in_p = _round_up(in_dim, LANE)
    h1_p = _round_up(h1_dim, LANE)
    h2_p = _round_up(h2_dim, LANE)
    out_p = _round_up(out_dim, LANE)

    w1p = _pad2(w1, in_p, h1_p).astype(jnp.bfloat16)
    w2p = _pad2(w2, h1_p, h2_p).astype(jnp.bfloat16)
    w3p = _pad2(w3, h2_p, out_p).astype(jnp.bfloat16)
    b1p = _pad2(b1, 1, h1_p)          # biases stay f32 (added in f32 epilogue)
    b2p = _pad2(b2, 1, h2_p)
    b3p = _pad2(b3, 1, out_p)

    # --- Batch tile selection + batch padding (handles ragged B). ---
    tb = max(SUBLANE, min(batch_tile, _round_up(B, SUBLANE)))
    tb = _round_up(tb, SUBLANE)
    b_p = _round_up(B, tb)
    if b_p // tb == 1 and tb % (2 * SUBLANE) == 0:
        # Ensure >= 2 parallel grid steps so both v7x TensorCores get work.
        tb //= 2
    grid = (b_p // tb,)

    xp = _pad2(x, b_p, in_p).astype(jnp.bfloat16)

    in_specs = [
        pl.BlockSpec((tb, in_p), lambda i: (i, 0)),     # x: tiled over batch
        pl.BlockSpec((in_p, h1_p), lambda i: (0, 0)),   # W1 (resident)
        pl.BlockSpec((1, h1_p), lambda i: (0, 0)),      # b1
        pl.BlockSpec((h1_p, h2_p), lambda i: (0, 0)),   # W2
        pl.BlockSpec((1, h2_p), lambda i: (0, 0)),      # b2
        pl.BlockSpec((h2_p, out_p), lambda i: (0, 0)),  # W3
        pl.BlockSpec((1, out_p), lambda i: (0, 0)),     # b3
    ]
    out_specs = pl.BlockSpec((tb, out_p), lambda i: (i, 0))

    # --- VMEM budget with headroom; keep below v7x's 64 MiB physical VMEM. ---
    weight_bytes = 2 * (in_p * h1_p + h1_p * h2_p + h2_p * out_p)   # bf16
    bias_bytes = 4 * (h1_p + h2_p + out_p)                          # f32
    per_step_bytes = (
        2 * (tb * in_p) * 2                 # x tile, double-buffered, bf16
        + 2 * (tb * out_p) * 4              # out tile, double-buffered, f32
        + 2 * (weight_bytes + bias_bytes)   # resident operands (2 buffers each)
        + (tb * h1_p + tb * h2_p) * 4       # f32 scratch for h1/h2
    )
    vmem_limit = int(min(max(4 * per_step_bytes, 32 * 1024 * 1024),
                         48 * 1024 * 1024))

    flops = 2 * b_p * (in_p * h1_p + h1_p * h2_p + h2_p * out_p)
    bytes_accessed = (xp.size * 2 + weight_bytes + bias_bytes + b_p * out_p * 4)

    out_padded = pl.pallas_call(
        mlp_kernel,
        out_shape=jax.ShapeDtypeStruct((b_p, out_p), jnp.float32),
        grid_spec=pltpu.PrefetchScalarGridSpec(
            num_scalar_prefetch=0,
            grid=grid,
            in_specs=in_specs,
            out_specs=out_specs,
            scratch_shapes=[
                pltpu.VMEM((tb, h1_p), jnp.float32),   # staged h1
                pltpu.VMEM((tb, h2_p), jnp.float32),   # staged h2
            ],
        ),
        compiler_params=pltpu.CompilerParams(
            dimension_semantics=("parallel",),
            vmem_limit_bytes=vmem_limit,
        ),
        cost_estimate=pl.CostEstimate(
            flops=flops, transcendentals=0, bytes_accessed=bytes_accessed),
    )(xp, w1p, b1p, w2p, b2p, w3p, b3p)

    # Slice off the batch/lane padding.
    return out_padded[:B, :out_dim]


def init_params(key, in_dim, n_hidden_1, n_hidden_2, out_dim):
    """PyTorch-like uniform(-1/sqrt(fan_in), 1/sqrt(fan_in)) init, f32."""
    ks = jax.random.split(key, 6)

    def lin(kw, kb, fan_in, fan_out):
        bound = 1.0 / jnp.sqrt(fan_in)
        w = jax.random.uniform(kw, (fan_in, fan_out), jnp.float32, -bound, bound)
        b = jax.random.uniform(kb, (1, fan_out), jnp.float32, -bound, bound)
        return w, b

    w1, b1 = lin(ks[0], ks[1], in_dim, n_hidden_1)
    w2, b2 = lin(ks[2], ks[3], n_hidden_1, n_hidden_2)
    w3, b3 = lin(ks[4], ks[5], n_hidden_2, out_dim)
    return {"w1": w1, "b1": b1, "w2": w2, "b2": b2, "w3": w3, "b3": b3}


def reference_forward(x, p):
    h1 = jnp.maximum(x @ p["w1"] + p["b1"], 0.0)
    h2 = jnp.maximum(h1 @ p["w2"] + p["b2"], 0.0)
    return h2 @ p["w3"] + p["b3"]


if __name__ == "__main__":
    # MNIST-style MLP at small but MXU-friendly demo shapes:
    # batch=512 (two 256-row parallel tiles), in=256, hidden1=128, hidden2=64, out=10.
    B, IN, H1, H2, OUT = 512, 256, 128, 64, 10

    key = jax.random.PRNGKey(0)
    kx, kp = jax.random.split(key)
    x = jax.random.normal(kx, (B, IN), jnp.float32)
    params = init_params(kp, IN, H1, H2, OUT)

    out = activation_net_forward(x, params, batch_tile=256)
    out = jax.block_until_ready(out)

    ref = reference_forward(x, params)
    assert out.shape == (B, OUT)
    # bf16 MXU inputs => loose tolerance vs. the pure-f32 reference.
    assert jnp.allclose(out, ref, atol=5e-2, rtol=5e-2), (
        float(jnp.max(jnp.abs(out - ref))))

    print("KERNEL_OK")
</pallas_src>

<mosaic_0001>
module attributes {stable_mosaic.version = 11 : i64} {
  func.func @mlp_kernel(%arg0: i32, %arg1: memref<256x256xbf16, #tpu.memory_space<vmem>>, %arg2: memref<256x128xbf16, #tpu.memory_space<vmem>>, %arg3: memref<1x128xf32, #tpu.memory_space<vmem>>, %arg4: memref<128x128xbf16, #tpu.memory_space<vmem>>, %arg5: memref<1x128xf32, #tpu.memory_space<vmem>>, %arg6: memref<128x128xbf16, #tpu.memory_space<vmem>>, %arg7: memref<1x128xf32, #tpu.memory_space<vmem>>, %arg8: memref<256x128xf32, #tpu.memory_space<vmem>>, %arg9: memref<256x128xf32, #tpu.memory_space<vmem>>, %arg10: memref<256x128xf32, #tpu.memory_space<vmem>>) attributes {dimension_semantics = [#tpu.dimension_semantics<parallel>], iteration_bounds = array<i64: 2>, scalar_prefetch = 0 : i64, scratch_operands = 2 : i64, tpu.core_type = #tpu.core_type<tc>, window_params = [{transform_indices = @transform_0, window_bounds = array<i64: 256, 256>}, {pipeline_mode = #tpu.pipeline_mode<synchronous>, transform_indices = @transform_1, window_bounds = array<i64: 256, 128>}, {pipeline_mode = #tpu.pipeline_mode<synchronous>, transform_indices = @transform_2, window_bounds = array<i64: 1, 128>}, {pipeline_mode = #tpu.pipeline_mode<synchronous>, transform_indices = @transform_3, window_bounds = array<i64: 128, 128>}, {pipeline_mode = #tpu.pipeline_mode<synchronous>, transform_indices = @transform_4, window_bounds = array<i64: 1, 128>}, {pipeline_mode = #tpu.pipeline_mode<synchronous>, transform_indices = @transform_5, window_bounds = array<i64: 128, 128>}, {pipeline_mode = #tpu.pipeline_mode<synchronous>, transform_indices = @transform_6, window_bounds = array<i64: 1, 128>}, {transform_indices = @transform_7, window_bounds = array<i64: 256, 128>}]} {
    %c0 = arith.constant 0 : index
    %c0_0 = arith.constant 0 : index
    %0 = vector.load %arg3[%c0, %c0_0] : memref<1x128xf32, #tpu.memory_space<vmem>>, vector<1x128xf32>
    %c0_1 = arith.constant 0 : index
    %c0_2 = arith.constant 0 : index
    %1 = vector.load %arg5[%c0_1, %c0_2] : memref<1x128xf32, #tpu.memory_space<vmem>>, vector<1x128xf32>
    %c0_3 = arith.constant 0 : index
    %c0_4 = arith.constant 0 : index
    %2 = vector.load %arg7[%c0_3, %c0_4] : memref<1x128xf32, #tpu.memory_space<vmem>>, vector<1x128xf32>
    %c0_5 = arith.constant 0 : index
    %c0_6 = arith.constant 0 : index
    %3 = vector.load %arg1[%c0_5, %c0_6] : memref<256x256xbf16, #tpu.memory_space<vmem>>, vector<256x256xbf16>
    %c0_7 = arith.constant 0 : index
    %c0_8 = arith.constant 0 : index
    %4 = vector.load %arg2[%c0_7, %c0_8] : memref<256x128xbf16, #tpu.memory_space<vmem>>, vector<256x128xbf16>
    %cst = arith.constant dense<0.000000e+00> : vector<256x128xf32>
    %5 = tpu.matmul %3, %4, %cst {dimension_numbers = #tpu.dot_dimension_numbers<[1], [0], [0], [1], [0, 0, 1, 1], [], []>} : vector<256x256xbf16>, vector<256x128xbf16>, vector<256x128xf32> -> vector<256x128xf32>
    %6 = vector.broadcast %0 : vector<1x128xf32> to vector<256x128xf32>
    %7 = arith.addf %5, %6 : vector<256x128xf32>
    %cst_9 = arith.constant 0.000000e+00 : f32
    %8 = vector.broadcast %cst_9 : f32 to vector<256x128xf32>
    %9 = arith.maximumf %7, %8 : vector<256x128xf32>
    %c0_10 = arith.constant 0 : index
    %c0_11 = arith.constant 0 : index
    %10 = vector.load %arg9[%c0_10, %c0_11] : memref<256x128xf32, #tpu.memory_space<vmem>>, vector<256x128xf32>
    tpu.vector_store %arg9[%c0_10, %c0_11], %9 {strides = array<i32>} : memref<256x128xf32, #tpu.memory_space<vmem>>, vector<256x128xf32>,
    %c0_12 = arith.constant 0 : index
    %c0_13 = arith.constant 0 : index
    %11 = vector.load %arg9[%c0_12, %c0_13] : memref<256x128xf32, #tpu.memory_space<vmem>>, vector<256x128xf32>
    %12 = arith.truncf %11 : vector<256x128xf32> to vector<256x128xbf16>
    %c0_14 = arith.constant 0 : index
    %c0_15 = arith.constant 0 : index
    %13 = vector.load %arg4[%c0_14, %c0_15] : memref<128x128xbf16, #tpu.memory_space<vmem>>, vector<128x128xbf16>
    %cst_16 = arith.constant dense<0.000000e+00> : vector<256x128xf32>
    %14 = tpu.matmul %12, %13, %cst_16 {dimension_numbers = #tpu.dot_dimension_numbers<[1], [0], [0], [1], [0, 0, 1, 1], [], []>} : vector<256x128xbf16>, vector<128x128xbf16>, vector<256x128xf32> -> vector<256x128xf32>
    %15 = vector.broadcast %1 : vector<1x128xf32> to vector<256x128xf32>
    %16 = arith.addf %14, %15 : vector<256x128xf32>
    %cst_17 = arith.constant 0.000000e+00 : f32
    %17 = vector.broadcast %cst_17 : f32 to vector<256x128xf32>
    %18 = arith.maximumf %16, %17 : vector<256x128xf32>
    %c0_18 = arith.constant 0 : index
    %c0_19 = arith.constant 0 : index
    %19 = vector.load %arg10[%c0_18, %c0_19] : memref<256x128xf32, #tpu.memory_space<vmem>>, vector<256x128xf32>
    tpu.vector_store %arg10[%c0_18, %c0_19], %18 {strides = array<i32>} : memref<256x128xf32, #tpu.memory_space<vmem>>, vector<256x128xf32>,
    %c0_20 = arith.constant 0 : index
    %c0_21 = arith.constant 0 : index
    %20 = vector.load %arg10[%c0_20, %c0_21] : memref<256x128xf32, #tpu.memory_space<vmem>>, vector<256x128xf32>
    %21 = arith.truncf %20 : vector<256x128xf32> to vector<256x128xbf16>
    %c0_22 = arith.constant 0 : index
    %c0_23 = arith.constant 0 : index
    %22 = vector.load %arg6[%c0_22, %c0_23] : memref<128x128xbf16, #tpu.memory_space<vmem>>, vector<128x128xbf16>
    %cst_24 = arith.constant dense<0.000000e+00> : vector<256x128xf32>
    %23 = tpu.matmul %21, %22, %cst_24 {dimension_numbers = #tpu.dot_dimension_numbers<[1], [0], [0], [1], [0, 0, 1, 1], [], []>} : vector<256x128xbf16>, vector<128x128xbf16>, vector<256x128xf32> -> vector<256x128xf32>
    %24 = vector.broadcast %2 : vector<1x128xf32> to vector<256x128xf32>
    %25 = arith.addf %23, %24 : vector<256x128xf32>
    %c0_25 = arith.constant 0 : index
    %c0_26 = arith.constant 0 : index
    %26 = vector.load %arg8[%c0_25, %c0_26] : memref<256x128xf32, #tpu.memory_space<vmem>>, vector<256x128xf32>
    tpu.vector_store %arg8[%c0_25, %c0_26], %25 {strides = array<i32>} : memref<256x128xf32, #tpu.memory_space<vmem>>, vector<256x128xf32>,
    return
  }
  func.func @transform_0(%arg0: i32) -> (i32, i32) {
    %c0_i32 = arith.constant 0 : i32
    %c0_i32_0 = arith.constant 0 : i32
    return %arg0, %c0_i32 : i32, i32
  }
  func.func @transform_1(%arg0: i32) -> (i32, i32) {
    %c0_i32 = arith.constant 0 : i32
    %c0_i32_0 = arith.constant 0 : i32
    %c0_i32_1 = arith.constant 0 : i32
    return %c0_i32, %c0_i32_0 : i32, i32
  }
  func.func @transform_2(%arg0: i32) -> (i32, i32) {
    %c0_i32 = arith.constant 0 : i32
    %c0_i32_0 = arith.constant 0 : i32
    %c0_i32_1 = arith.constant 0 : i32
    return %c0_i32, %c0_i32_0 : i32, i32
  }
  func.func @transform_3(%arg0: i32) -> (i32, i32) {
    %c0_i32 = arith.constant 0 : i32
    %c0_i32_0 = arith.constant 0 : i32
    %c0_i32_1 = arith.constant 0 : i32
    return %c0_i32, %c0_i32_0 : i32, i32
  }
  func.func @transform_4(%arg0: i32) -> (i32, i32) {
    %c0_i32 = arith.constant 0 : i32
    %c0_i32_0 = arith.constant 0 : i32
    %c0_i32_1 = arith.constant 0 : i32
    return %c0_i32, %c0_i32_0 : i32, i32
  }
  func.func @transform_5(%arg0: i32) -> (i32, i32) {
    %c0_i32 = arith.constant 0 : i32
    %c0_i32_0 = arith.constant 0 : i32
    %c0_i32_1 = arith.constant 0 : i32
    return %c0_i32, %c0_i32_0 : i32, i32
  }
  func.func @transform_6(%arg0: i32) -> (i32, i32) {
    %c0_i32 = arith.constant 0 : i32
    %c0_i32_0 = arith.constant 0 : i32
    %c0_i32_1 = arith.constant 0 : i32
    return %c0_i32, %c0_i32_0 : i32, i32
  }
  func.func @transform_7(%arg0: i32) -> (i32, i32) {
    %c0_i32 = arith.constant 0 : i32
    %c0_i32_0 = arith.constant 0 : i32
    return %arg0, %c0_i32 : i32, i32
  }
}

</mosaic_0001>

<llo_original>
// kernel: tpu_custom_call.1
$region0: #{tpu_custom_call.1}
  #allocation0 [shape = 'u32[]', space=smem, size = 0x4, offset = 0x4, fixed_abs, tag = 'smem constant byte address 0x4 - core index']
  #allocation1 [shape = 'u32[144,128]{1,0:T(1,128)}', space=vmem, size = 0x12000, scoped, tag = 'internal scratch']
  #allocation2 [shape = 'f32[256,128]{1,0:T(8,128)}', space=vmem, size = 0x20000, scoped, tag = 'scratch operand']
  #allocation3 [shape = 'f32[256,128]{1,0:T(8,128)}', space=vmem, size = 0x20000, scoped, tag = 'scratch operand']
  %s0 = inlined_call_operand.hbm [shape: bf16[512,256], index: 0, kind: input, shape index: {}]
  %s1 = inlined_call_operand.hbm [shape: bf16[256,128], index: 1, kind: input, shape index: {}]
  %s2 = inlined_call_operand.vmem [shape: f32[1,128], index: 2, kind: input, shape index: {}]
  %s3 = inlined_call_operand.hbm [shape: bf16[128,128], index: 3, kind: input, shape index: {}]
  %s4 = inlined_call_operand.vmem [shape: f32[1,128], index: 4, kind: input, shape index: {}]
  %s5 = inlined_call_operand.hbm [shape: bf16[128,128], index: 5, kind: input, shape index: {}]
  %s6 = inlined_call_operand.vmem [shape: f32[1,128], index: 6, kind: input, shape index: {}]
  %s7 = inlined_call_operand.hbm [shape: f32[512,128], index: 7, kind: output, shape index: {}]
  %s8 = sld [smem:[#allocation0]]
  $region77: #{tpu_custom_call.1} parent=0
    _
  %s10 = ssub.s32 1, %s8
  %s11 = scalar_select 0, %s10, %s8
  $region1: #{tpu_custom_call.1} parent=0
    #allocation4 [shape = 'u8[262144]{0}', space=vmem, size = 0x40000, scoped, tag = 'input window, operand 0']
    #allocation5 [shape = 's32[2]{0}', space=sflag, size = 0x8, scoped, tag = 'scoped memory for tpu_custom_call.1']
    #allocation6 [shape = 's32[2]{0}', space=sflag, size = 0x8, scoped, tag = 'scoped memory for tpu_custom_call.1']
    #allocation7 [shape = 'u8[65536]{0}', space=vmem, size = 0x10000, scoped, tag = 'input window, operand 1, single buffered']
    #allocation8 [shape = 's32[1]{0}', space=sflag, size = 0x4, scoped, tag = 'scoped memory for tpu_custom_call.1']
    #allocation9 [shape = 'u8[32768]{0}', space=vmem, size = 0x8000, scoped, tag = 'input window, operand 3, single buffered']
    #allocation10 [shape = 'u8[32768]{0}', space=vmem, size = 0x8000, scoped, tag = 'input window, operand 5, single buffered']
    #allocation11 [shape = 's32[1]{0}', space=sflag, size = 0x4, scoped, tag = 'scoped memory for tpu_custom_call.1']
    #allocation12 [shape = 'u8[262144]{0}', space=vmem, size = 0x40000, scoped, tag = 'output window, operand 0']
    %12 = vsyncpa [#allocation5], 0
    %s13 = scalar_lea.sflag [#allocation5], 1
    %14 = vsyncpa %s13, 0
    %15 = vsyncpa [#allocation8], 0
    %16 = vsyncpa [#allocation11], 0
    %17 = vsyncpa [#allocation6], 0
    %s18 = scalar_lea.sflag [#allocation6], 1
    %19 = vsyncpa %s18, 0
    loop: start=0, step=1, limit=4
    $region2: #{tpu_custom_call.1} parent=1 // loop_pre_header
      _
    $region3: #{tpu_custom_call.1} parent=1 // loop_header
      %s21 = sphi 0, %s25
      %p22 = scmp.ge.s32.totalorder %s21, 4
      %s31 = sphi 0, %s33
      %s34 = sphi 0, %s31
      %s35 = sphi 0, %s34
      %s51 = sphi 0, %s35
      %s55 = sphi 0, %s55
      %s57 = sphi 0, %s55
      %s58 = sphi 0, %s57
      %s72 = sphi 0, %s58
      %s76 = sphi 0, %s76
      %s78 = sphi 0, %s76
      %s79 = sphi 0, %s78
      %s93 = sphi 0, %s79
      %s97 = sphi 0, %s97
      %s99 = sphi 0, %s97
      %s100 = sphi 0, %s99
      %s114 = sphi 0, %s100
      %s118 = sphi 0, %s118
      %s120 = sphi 0, %s118
      %s121 = sphi 0, %s120
      %s135 = sphi 0, %s121
      %s139 = sphi 0, %s139
      %s141 = sphi 0, %s139
      %s142 = sphi 0, %s141
      %s156 = sphi 0, %s142
      %s160 = sphi 0, %s160
      %s162 = sphi 0, %s160
      %s163 = sphi 0, %s162
      %s177 = sphi 0, %s163
      %s183 = sphi 0, %s185
      %s186 = sphi 0, %s183
      %s187 = sphi 0, %s186
      %s203 = sphi 0, %s187
    $region4: #{tpu_custom_call.1} parent=1 // loop_header_branch
      %24 = sbr.rel (%p22) target = $region8
    $region5: #{tpu_custom_call.1} parent=1 // loop_body
      %s26 = ssub.s32 %s21, 1
      %s27 = ssub.s32 %s21, 2
      %s28 = sadd.s32 %s21, 1
      %s29 = ssub.s32 %s21, %s28
      %p30 = scmp.eq.s32.totalorder %s29, 0
      %s32 = sadd.s32 %s31, 1
      %s33 = scalar_select %p30, %s31, %s32
      %p36 = pneg %p30
      %p37 = scmp.eq.s32.totalorder %s21, 1
      %p38 = por %p36, %p37
      %p39 = scmp.ne.s32.totalorder %s31, %s34
      %p40 = scmp.eq.s32.totalorder %s21, 0
      %p41 = por %p39, %p40
      %p42 = scmp.ne.s32.totalorder %s31, %s34
      %p43 = scmp.eq.s32.totalorder %s26, 1
      %p44 = por %p42, %p43
      %p45 = scmp.ne.s32.totalorder %s34, %s35
      %p46 = scmp.eq.s32.totalorder %s26, 0
      %p47 = por %p45, %p46
      %p48 = scmp.ne.s32.totalorder %s34, %s35
      %p49 = scmp.eq.s32.totalorder %s27, 1
      %p50 = por %p48, %p49
      %p52 = scmp.ne.s32.totalorder %s35, %s51
      %p53 = scmp.eq.s32.totalorder %s27, 0
      %p54 = por %p52, %p53
      %s56 = sadd.s32 %s55, 1
      %p59 = scmp.eq.s32.totalorder %s21, 1
      %p60 = scmp.ne.s32.totalorder %s55, %s57
      %p61 = scmp.eq.s32.totalorder %s21, 0
      %p62 = por %p60, %p61
      %p63 = scmp.ne.s32.totalorder %s55, %s57
      %p64 = scmp.eq.s32.totalorder %s26, 1
      %p65 = por %p63, %p64
      %p66 = scmp.ne.s32.totalorder %s57, %s58
      %p67 = scmp.eq.s32.totalorder %s26, 0
      %p68 = por %p66, %p67
      %p69 = scmp.ne.s32.totalorder %s57, %s58
      %p70 = scmp.eq.s32.totalorder %s27, 1
      %p71 = por %p69, %p70
      %p73 = scmp.ne.s32.totalorder %s58, %s72
      %p74 = scmp.eq.s32.totalorder %s27, 0
      %p75 = por %p73, %p74
      %s77 = sadd.s32 %s76, 1
      %p80 = scmp.eq.s32.totalorder %s21, 1
      %p81 = scmp.ne.s32.totalorder %s76, %s78
      %p82 = scmp.eq.s32.totalorder %s21, 0
      %p83 = por %p81, %p82
      %p84 = scmp.ne.s32.totalorder %s76, %s78
      %p85 = scmp.eq.s32.totalorder %s26, 1
      %p86 = por %p84, %p85
      %p87 = scmp.ne.s32.totalorder %s78, %s79
      %p88 = scmp.eq.s32.totalorder %s26, 0
      %p89 = por %p87, %p88
      %p90 = scmp.ne.s32.totalorder %s78, %s79
      %p91 = scmp.eq.s32.totalorder %s27, 1
      %p92 = por %p90, %p91
      %p94 = scmp.ne.s32.totalorder %s79, %s93
      %p95 = scmp.eq.s32.totalorder %s27, 0
      %p96 = por %p94, %p95
      %s98 = sadd.s32 %s97, 1
      %p101 = scmp.eq.s32.totalorder %s21, 1
      %p102 = scmp.ne.s32.totalorder %s97, %s99
      %p103 = scmp.eq.s32.totalorder %s21, 0
      %p104 = por %p102, %p103
      %p105 = scmp.ne.s32.totalorder %s97, %s99
      %p106 = scmp.eq.s32.totalorder %s26, 1
      %p107 = por %p105, %p106
      %p108 = scmp.ne.s32.totalorder %s99, %s100
      %p109 = scmp.eq.s32.totalorder %s26, 0
      %p110 = por %p108, %p109
      %p111 = scmp.ne.s32.totalorder %s99, %s100
      %p112 = scmp.eq.s32.totalorder %s27, 1
      %p113 = por %p111, %p112
      %p115 = scmp.ne.s32.totalorder %s100, %s114
      %p116 = scmp.eq.s32.totalorder %s27, 0
      %p117 = por %p115, %p116
      %s119 = sadd.s32 %s118, 1
      %p122 = scmp.eq.s32.totalorder %s21, 1
      %p123 = scmp.ne.s32.totalorder %s118, %s120
      %p124 = scmp.eq.s32.totalorder %s21, 0
      %p125 = por %p123, %p124
      %p126 = scmp.ne.s32.totalorder %s118, %s120
      %p127 = scmp.eq.s32.totalorder %s26, 1
      %p128 = por %p126, %p127
      %p129 = scmp.ne.s32.totalorder %s120, %s121
      %p130 = scmp.eq.s32.totalorder %s26, 0
      %p131 = por %p129, %p130
      %p132 = scmp.ne.s32.totalorder %s120, %s121
      %p133 = scmp.eq.s32.totalorder %s27, 1
      %p134 = por %p132, %p133
      %p136 = scmp.ne.s32.totalorder %s121, %s135
      %p137 = scmp.eq.s32.totalorder %s27, 0
      %p138 = por %p136, %p137
      %s140 = sadd.s32 %s139, 1
      %p143 = scmp.eq.s32.totalorder %s21, 1
      %p144 = scmp.ne.s32.totalorder %s139, %s141
      %p145 = scmp.eq.s32.totalorder %s21, 0
      %p146 = por %p144, %p145
      %p147 = scmp.ne.s32.totalorder %s139, %s141
      %p148 = scmp.eq.s32.totalorder %s26, 1
      %p149 = por %p147, %p148
      %p150 = scmp.ne.s32.totalorder %s141, %s142
      %p151 = scmp.eq.s32.totalorder %s26, 0
      %p152 = por %p150, %p151
      %p153 = scmp.ne.s32.totalorder %s141, %s142
      %p154 = scmp.eq.s32.totalorder %s27, 1
      %p155 = por %p153, %p154
      %p157 = scmp.ne.s32.totalorder %s142, %s156
      %p158 = scmp.eq.s32.totalorder %s27, 0
      %p159 = por %p157, %p158
      %s161 = sadd.s32 %s160, 1
      %p164 = scmp.eq.s32.totalorder %s21, 1
      %p165 = scmp.ne.s32.totalorder %s160, %s162
      %p166 = scmp.eq.s32.totalorder %s21, 0
      %p167 = por %p165, %p166
      %p168 = scmp.ne.s32.totalorder %s160, %s162
      %p169 = scmp.eq.s32.totalorder %s26, 1
      %p170 = por %p168, %p169
      %p171 = scmp.ne.s32.totalorder %s162, %s163
      %p172 = scmp.eq.s32.totalorder %s26, 0
      %p173 = por %p171, %p172
      %p174 = scmp.ne.s32.totalorder %s162, %s163
      %p175 = scmp.eq.s32.totalorder %s27, 1
      %p176 = por %p174, %p175
      %p178 = scmp.ne.s32.totalorder %s163, %s177
      %p179 = scmp.eq.s32.totalorder %s27, 0
      %p180 = por %p178, %p179
      %s181 = ssub.s32 %s21, %s28
      %p182 = scmp.eq.s32.totalorder %s181, 0
      %s184 = sadd.s32 %s183, 1
      %s185 = scalar_select %p182, %s183, %s184
      %p188 = pneg %p182
      %p189 = scmp.eq.s32.totalorder %s21, 1
      %p190 = por %p188, %p189
      %p191 = scmp.ne.s32.totalorder %s183, %s186
      %p192 = scmp.eq.s32.totalorder %s21, 0
      %p193 = por %p191, %p192
      %p194 = scmp.ne.s32.totalorder %s183, %s186
      %p195 = scmp.eq.s32.totalorder %s26, 1
      %p196 = por %p194, %p195
      %p197 = scmp.ne.s32.totalorder %s186, %s187
      %p198 = scmp.eq.s32.totalorder %s26, 0
      %p199 = por %p197, %p198
      %p200 = scmp.ne.s32.totalorder %s186, %s187
      %p201 = scmp.eq.s32.totalorder %s27, 1
      %p202 = por %p200, %p201
      %p204 = scmp.ne.s32.totalorder %s187, %s203
      %p205 = scmp.eq.s32.totalorder %s27, 0
      %p206 = por %p204, %p205
      %p207 = scmp.le.s32.totalorder 1, %s21
      %p208 = scmp.lt.s32.totalorder %s21, 3
      %p209 = pnand %p207, %p208
      %p210 = pneg %p209
      // Predicated region
      $region9: #{tpu_custom_call.1} parent=5 // pred_check
        _
      $region10: #{tpu_custom_call.1} parent=5 // pred_check_branch
        %212 = sbr.rel (%p209) target = $region12
      $region11: #{tpu_custom_call.1} parent=5 // pred_region
        %s213 = ssub.s32 %s21, 1
        // Predicated region
        $region13: #{tpu_custom_call.1} parent=11 // pred_check
          %p214 = pneg %p68
        $region14: #{tpu_custom_call.1} parent=11 // pred_check_branch
          %216 = sbr.rel (%p214) target = $region16
        $region15: #{tpu_custom_call.1} parent=11 // pred_region
          %s218 = ssub.s32 2048, 2048
          %219 = vsyncadd [#allocation8], %s218
          %s220 = sshll.u32 [#allocation7], 4
          %s221 = int_to_ptr.vmem [resolvable:$true] %s220
          %226 = dma.hbm_to_vmem [thread:$0]  %s1, 2048, %s221, [#allocation8], 64, 64, 4
        $region16: #{tpu_custom_call.1} parent=11 // pred_fallthru
          _
        // Predicated region
        $region17: #{tpu_custom_call.1} parent=11 // pred_check
          %p227 = pneg %p89
        $region18: #{tpu_custom_call.1} parent=11 // pred_check_branch
          %229 = sbr.rel (%p227) target = $region20
        $region19: #{tpu_custom_call.1} parent=11 // pred_region
          _
        $region20: #{tpu_custom_call.1} parent=11 // pred_fallthru
          _
        // Predicated region
        $region21: #{tpu_custom_call.1} parent=11 // pred_check
          %p230 = pneg %p110
        $region22: #{tpu_custom_call.1} parent=11 // pred_check_branch
          %232 = sbr.rel (%p230) target = $region24
        $region23: #{tpu_custom_call.1} parent=11 // pred_region
          %s234 = ssub.s32 1024, 1024
          %235 = vsyncadd [#allocation8], %s234
          %s236 = sshll.u32 [#allocation9], 4
          %s237 = int_to_ptr.vmem [resolvable:$true] %s236
          %242 = dma.hbm_to_vmem [thread:$0]  %s3, 1024, %s237, [#allocation8], 64, 64, 4
        $region24: #{tpu_custom_call.1} parent=11 // pred_fallthru
          _
        // Predicated region
        $region25: #{tpu_custom_call.1} parent=11 // pred_check
          %p243 = pneg %p131
        $region26: #{tpu_custom_call.1} parent=11 // pred_check_branch
          %245 = sbr.rel (%p243) target = $region28
        $region27: #{tpu_custom_call.1} parent=11 // pred_region
          _
        $region28: #{tpu_custom_call.1} parent=11 // pred_fallthru
          _
        // Predicated region
        $region29: #{tpu_custom_call.1} parent=11 // pred_check
          %p246 = pneg %p152
        $region30: #{tpu_custom_call.1} parent=11 // pred_check_branch
          %248 = sbr.rel (%p246) target = $region32
        $region31: #{tpu_custom_call.1} parent=11 // pred_region
          %s250 = ssub.s32 1024, 1024
          %251 = vsyncadd [#allocation11], %s250
          %s252 = sshll.u32 [#allocation10], 4
          %s253 = int_to_ptr.vmem [resolvable:$true] %s252
          %258 = dma.hbm_to_vmem [thread:$0]  %s5, 1024, %s253, [#allocation11], 64, 64, 4
        $region32: #{tpu_custom_call.1} parent=11 // pred_fallthru
          _
        // Predicated region
        $region33: #{tpu_custom_call.1} parent=11 // pred_check
          %p259 = pneg %p173
        $region34: #{tpu_custom_call.1} parent=11 // pred_check_branch
          %261 = sbr.rel (%p259) target = $region36
        $region35: #{tpu_custom_call.1} parent=11 // pred_region
          _
        $region36: #{tpu_custom_call.1} parent=11 // pred_fallthru
          _
      $region12: #{tpu_custom_call.1} parent=5 // pred_fallthru
        _
      %p262 = scmp.lt.s32.totalorder %s21, 2
      // Predicated region
      $region37: #{tpu_custom_call.1} parent=5 // pred_check
        %p263 = pneg %p262
      $region38: #{tpu_custom_call.1} parent=5 // pred_check_branch
        %265 = sbr.rel (%p263) target = $region40
      $region39: #{tpu_custom_call.1} parent=5 // pred_region
        // Predicated region
        $region41: #{tpu_custom_call.1} parent=39 // pred_check
          %p266 = pneg %p41
        $region42: #{tpu_custom_call.1} parent=39 // pred_check_branch
          %268 = sbr.rel (%p266) target = $region44
        $region43: #{tpu_custom_call.1} parent=39 // pred_region
          %s269 = sand.u32 %s31, 1
          %s270 = scalar_lea.sflag [#allocation5], %s269
          %s271 = sand.u32 %s31, 1
          %s272 = smul.addr %s271, 256
          %s273 = scalar_lea.vmem [#allocation4], %s272
          %s274 = smul.u32 32, %s21
          %s276 = ssub.s32 4096, 4096
          %277 = vsyncadd %s270, %s276
          %s278 = smul.addr %s274, 2
          %s279 = smul.addr %s278, 64
          %s280 = scalar_lea.hbm %s0, %s279
          %s281 = sshll.u32 %s273, 4
          %s282 = int_to_ptr.vmem [resolvable:$true] %s281
          %287 = dma.hbm_to_vmem [thread:$0]  %s280, 4096, %s282, %s270, 128, 128, 8
        $region44: #{tpu_custom_call.1} parent=39 // pred_fallthru
          _
      $region40: #{tpu_custom_call.1} parent=5 // pred_fallthru
        _
      %p288 = scmp.le.s32.totalorder 1, %s21
      %p289 = scmp.lt.s32.totalorder %s21, 3
      %p290 = pnand %p288, %p289
      %p291 = pneg %p290
      // Predicated region
      $region45: #{tpu_custom_call.1} parent=5 // pred_check
        _
      $region46: #{tpu_custom_call.1} parent=5 // pred_check_branch
        %293 = sbr.rel (%p290) target = $region48
      $region47: #{tpu_custom_call.1} parent=5 // pred_region
        %s294 = ssub.s32 %s21, 1
        %s295 = sand.u32 %s34, 1
        %s296 = scalar_lea.sflag [#allocation5], %s295
        %s297 = sand.u32 %s34, 1
        %s298 = smul.addr %s297, 256
        %s299 = scalar_lea.vmem [#allocation4], %s298
        // Predicated region
        $region49: #{tpu_custom_call.1} parent=47 // pred_check
          %p300 = pneg %p47
        $region50: #{tpu_custom_call.1} parent=47 // pred_check_branch
          %302 = sbr.rel (%p300) target = $region52
        $region51: #{tpu_custom_call.1} parent=47 // pred_region
          %303 = dma.done %s296, 4096
        $region52: #{tpu_custom_call.1} parent=47 // pred_fallthru
          _
        // Predicated region
        $region53: #{tpu_custom_call.1} parent=47 // pred_check
          %p304 = pneg %p68
        $region54: #{tpu_custom_call.1} parent=47 // pred_check_branch
          %306 = sbr.rel (%p304) target = $region56
        $region55: #{tpu_custom_call.1} parent=47 // pred_region
          %307 = dma.done [#allocation8], 2048
        $region56: #{tpu_custom_call.1} parent=47 // pred_fallthru
          _
        // Predicated region
        $region57: #{tpu_custom_call.1} parent=47 // pred_check
          %p308 = pneg %p110
        $region58: #{tpu_custom_call.1} parent=47 // pred_check_branch
          %310 = sbr.rel (%p308) target = $region60
        $region59: #{tpu_custom_call.1} parent=47 // pred_region
          %311 = dma.done [#allocation8], 1024
        $region60: #{tpu_custom_call.1} parent=47 // pred_fallthru
          _
        // Predicated region
        $region61: #{tpu_custom_call.1} parent=47 // pred_check
          %p312 = pneg %p152
        $region62: #{tpu_custom_call.1} parent=47 // pred_check_branch
          %314 = sbr.rel (%p312) target = $region64
        $region63: #{tpu_custom_call.1} parent=47 // pred_region
          %315 = dma.done [#allocation11], 1024
        $region64: #{tpu_custom_call.1} parent=47 // pred_fallthru
          _
        %s316 = sand.u32 %s34, 1
        %s317 = scalar_lea.sflag [#allocation5], %s316
        %s318 = sand.u32 %s34, 1
        %s319 = smul.addr %s318, 256
        %s320 = scalar_lea.vmem [#allocation4], %s319
        %p321 = pneg %p47
        %p322 = pneg %p44
        %p323 = pneg %p68
        %p324 = pneg %p65
        %p325 = pneg %p89
        %p326 = pneg %p86
        %p327 = pneg %p110
        %p328 = pneg %p107
        %p329 = pneg %p131
        %p330 = pneg %p128
        %p331 = pneg %p152
        %p332 = pneg %p149
        %p333 = pneg %p173
        %p334 = pneg %p170
        %p335 = pneg %p199
        %p336 = pneg %p196
        %s337 = sand.u32 %s186, 1
        %s338 = scalar_lea.sflag [#allocation6], %s337
        %s339 = sand.u32 %s186, 1
        %s340 = smul.addr %s339, 256
        %s341 = scalar_lea.vmem [#allocation12], %s340
        %s342 = smul.u32 32, %s26
        %s343 = smul.u32 32, %s26
        %v345 = vld [vmem:[%s2] sm:$0x1]
        %v346 = vld [vmem:[%s4] sm:$0x1]
        %v347 = vld [vmem:[%s6] sm:$0x1]
        %v348 = vld [vmem:[%s299] sm:$0xff]
        %v349 = vld [vmem:[%s299 + $0x8] sm:$0xff]
        %v350 = vld [vmem:[%s299 + $0x10] sm:$0xff]
        %v351 = vld [vmem:[%s299 + $0x18] sm:$0xff]
        %v352 = vld [vmem:[%s299 + $0x20] sm:$0xff]
        %v353 = vld [vmem:[%s299 + $0x28] sm:$0xff]
        %v354 = vld [vmem:[%s299 + $0x30] sm:$0xff]
        %v355 = vld [vmem:[%s299 + $0x38] sm:$0xff]
        %v356 = vld [vmem:[%s299 + $0x40] sm:$0xff]
        %v357 = vld [vmem:[%s299 + $0x48] sm:$0xff]
        %v358 = vld [vmem:[%s299 + $0x50] sm:$0xff]
        %v359 = vld [vmem:[%s299 + $0x58] sm:$0xff]
        %v360 = vld [vmem:[%s299 + $0x60] sm:$0xff]
        %v361 = vld [vmem:[%s299 + $0x68] sm:$0xff]
        %v362 = vld [vmem:[%s299 + $0x70] sm:$0xff]
        %v363 = vld [vmem:[%s299 + $0x78] sm:$0xff]
        %v364 = vld [vmem:[%s299 + $0x80] sm:$0xff]
        %v365 = vld [vmem:[%s299 + $0x88] sm:$0xff]
        %v366 = vld [vmem:[%s299 + $0x90] sm:$0xff]
        %v367 = vld [vmem:[%s299 + $0x98] sm:$0xff]
        %v368 = vld [vmem:[%s299 + $0xa0] sm:$0xff]
        %v369 = vld [vmem:[%s299 + $0xa8] sm:$0xff]
        %v370 = vld [vmem:[%s299 + $0xb0] sm:$0xff]
        %v371 = vld [vmem:[%s299 + $0xb8] sm:$0xff]
        %v372 = vld [vmem:[%s299 + $0xc0] sm:$0xff]
        %v373 = vld [vmem:[%s299 + $0xc8] sm:$0xff]
        %v374 = vld [vmem:[%s299 + $0xd0] sm:$0xff]
        %v375 = vld [vmem:[%s299 + $0xd8] sm:$0xff]
        %v376 = vld [vmem:[%s299 + $0xe0] sm:$0xff]
        %v377 = vld [vmem:[%s299 + $0xe8] sm:$0xff]
        %v378 = vld [vmem:[%s299 + $0xf0] sm:$0xff]
        %v379 = vld [vmem:[%s299 + $0xf8] sm:$0xff]
        %v380 = vld [vmem:[#allocation7] sm:$0xf]
        %v381 = vld [vmem:[#allocation7 + $0x4] sm:$0xf]
        %v382 = vld [vmem:[#allocation7 + $0x8] sm:$0xf]
        %v383 = vld [vmem:[#allocation7 + $0xc] sm:$0xf]
        %v384 = vld [vmem:[#allocation7 + $0x10] sm:$0xf]
        %v385 = vld [vmem:[#allocation7 + $0x14] sm:$0xf]
        %v386 = vld [vmem:[#allocation7 + $0x18] sm:$0xf]
        %v387 = vld [vmem:[#allocation7 + $0x1c] sm:$0xf]
        %v388 = vld [vmem:[#allocation7 + $0x20] sm:$0xf]
        %v389 = vld [vmem:[#allocation7 + $0x24] sm:$0xf]
        %v390 = vld [vmem:[#allocation7 + $0x28] sm:$0xf]
        %v391 = vld [vmem:[#allocation7 + $0x2c] sm:$0xf]
        %v392 = vld [vmem:[#allocation7 + $0x30] sm:$0xf]
        %v393 = vld [vmem:[#allocation7 + $0x34] sm:$0xf]
        %v394 = vld [vmem:[#allocation7 + $0x38] sm:$0xf]
        %v395 = vld [vmem:[#allocation7 + $0x3c] sm:$0xf]
        %v396 = vld [vmem:[#allocation7 + $0x40] sm:$0xf]
        %v397 = vld [vmem:[#allocation7 + $0x44] sm:$0xf]
        %v398 = vld [vmem:[#allocation7 + $0x48] sm:$0xf]
        %v399 = vld [vmem:[#allocation7 + $0x4c] sm:$0xf]
        %v400 = vld [vmem:[#allocation7 + $0x50] sm:$0xf]
        %v401 = vld [vmem:[#allocation7 + $0x54] sm:$0xf]
        %v402 = vld [vmem:[#allocation7 + $0x58] sm:$0xf]
        %v403 = vld [vmem:[#allocation7 + $0x5c] sm:$0xf]
        %v404 = vld [vmem:[#allocation7 + $0x60] sm:$0xf]
        %v405 = vld [vmem:[#allocation7 + $0x64] sm:$0xf]
        %v406 = vld [vmem:[#allocation7 + $0x68] sm:$0xf]
        %v407 = vld [vmem:[#allocation7 + $0x6c] sm:$0xf]
        %v408 = vld [vmem:[#allocation7 + $0x70] sm:$0xf]
        %v409 = vld [vmem:[#allocation7 + $0x74] sm:$0xf]
        %v410 = vld [vmem:[#allocation7 + $0x78] sm:$0xf]
        %v411 = vld [vmem:[#allocation7 + $0x7c] sm:$0xf]
        %v413 = vlaneseq
        %v414 = vshrl.u32 %v413, 7
        %v415 = vsub.s32 0, %v414
        %v416 = vrot.slane %v345, %v415
        %v450 = vunpack.c.l.b16 %v348
        %v451 = vunpack.c.h.b16 %v348
        %v452 = vunpack.c.l.b16 %v349
        %v453 = vunpack.c.h.b16 %v349
        %v454 = vunpack.c.l.b16 %v350
        %v455 = vunpack.c.h.b16 %v350
        %v456 = vunpack.c.l.b16 %v351
        %v457 = vunpack.c.h.b16 %v351
        %v458 = vunpack.c.l.b16 %v352
        %v459 = vunpack.c.h.b16 %v352
        %v460 = vunpack.c.l.b16 %v353
        %v461 = vunpack.c.h.b16 %v353
        %v462 = vunpack.c.l.b16 %v354
        %v463 = vunpack.c.h.b16 %v354
        %v464 = vunpack.c.l.b16 %v355
        %v465 = vunpack.c.h.b16 %v355
        %v466 = vunpack.c.l.b16 %v356
        %v467 = vunpack.c.h.b16 %v356
        %v468 = vunpack.c.l.b16 %v357
        %v469 = vunpack.c.h.b16 %v357
        %v470 = vunpack.c.l.b16 %v358
        %v471 = vunpack.c.h.b16 %v358
        %v472 = vunpack.c.l.b16 %v359
        %v473 = vunpack.c.h.b16 %v359
        %v474 = vunpack.c.l.b16 %v360
        %v475 = vunpack.c.h.b16 %v360
        %v476 = vunpack.c.l.b16 %v361
        %v477 = vunpack.c.h.b16 %v361
        %v478 = vunpack.c.l.b16 %v362
        %v479 = vunpack.c.h.b16 %v362
        %v480 = vunpack.c.l.b16 %v363
        %v481 = vunpack.c.h.b16 %v363
        %v482 = vunpack.c.l.b16 %v364
        %v483 = vunpack.c.h.b16 %v364
        %v484 = vunpack.c.l.b16 %v365
        %v485 = vunpack.c.h.b16 %v365
        %v486 = vunpack.c.l.b16 %v366
        %v487 = vunpack.c.h.b16 %v366
        %v488 = vunpack.c.l.b16 %v367
        %v489 = vunpack.c.h.b16 %v367
        %v490 = vunpack.c.l.b16 %v368
        %v491 = vunpack.c.h.b16 %v368
        %v492 = vunpack.c.l.b16 %v369
        %v493 = vunpack.c.h.b16 %v369
        %v494 = vunpack.c.l.b16 %v370
        %v495 = vunpack.c.h.b16 %v370
        %v496 = vunpack.c.l.b16 %v371
        %v497 = vunpack.c.h.b16 %v371
        %v498 = vunpack.c.l.b16 %v372
        %v499 = vunpack.c.h.b16 %v372
        %v500 = vunpack.c.l.b16 %v373
        %v501 = vunpack.c.h.b16 %v373
        %v502 = vunpack.c.l.b16 %v374
        %v503 = vunpack.c.h.b16 %v374
        %v504 = vunpack.c.l.b16 %v375
        %v505 = vunpack.c.h.b16 %v375
        %v506 = vunpack.c.l.b16 %v376
        %v507 = vunpack.c.h.b16 %v376
        %v508 = vunpack.c.l.b16 %v377
        %v509 = vunpack.c.h.b16 %v377
        %v510 = vunpack.c.l.b16 %v378
        %v511 = vunpack.c.h.b16 %v378
        %v512 = vunpack.c.l.b16 %v379
        %v513 = vunpack.c.h.b16 %v379
        %v514 = vpack.c.b16 %v452, %v450
        %v515 = vpack.c.b16 %v453, %v451
        %v516 = vpack.c.b16 %v456, %v454
        %v517 = vpack.c.b16 %v457, %v455
        %v518 = vpack.c.b16 %v460, %v458
        %v519 = vpack.c.b16 %v461, %v459
        %v520 = vpack.c.b16 %v464, %v462
        %v521 = vpack.c.b16 %v465, %v463
        %v522 = vpack.c.b16 %v468, %v466
        %v523 = vpack.c.b16 %v469, %v467
        %v524 = vpack.c.b16 %v472, %v470
        %v525 = vpack.c.b16 %v473, %v471
        %v526 = vpack.c.b16 %v476, %v474
        %v527 = vpack.c.b16 %v477, %v475
        %v528 = vpack.c.b16 %v480, %v478
        %v529 = vpack.c.b16 %v481, %v479
        %v530 = vpack.c.b16 %v484, %v482
        %v531 = vpack.c.b16 %v485, %v483
        %v532 = vpack.c.b16 %v488, %v486
        %v533 = vpack.c.b16 %v489, %v487
        %v534 = vpack.c.b16 %v492, %v490
        %v535 = vpack.c.b16 %v493, %v491
        %v536 = vpack.c.b16 %v496, %v494
        %v537 = vpack.c.b16 %v497, %v495
        %v538 = vpack.c.b16 %v500, %v498
        %v539 = vpack.c.b16 %v501, %v499
        %v540 = vpack.c.b16 %v504, %v502
        %v541 = vpack.c.b16 %v505, %v503
        %v542 = vpack.c.b16 %v508, %v506
        %v543 = vpack.c.b16 %v509, %v507
        %v544 = vpack.c.b16 %v512, %v510
        %v545 = vpack.c.b16 %v513, %v511
        %v610 = vunpack.c.l.b16 %v380
        %v611 = vunpack.c.l.b16 %v381
        %v612 = vunpack.c.l.b16 %v382
        %v613 = vunpack.c.l.b16 %v383
        %v614 = vunpack.c.l.b16 %v384
        %v615 = vunpack.c.l.b16 %v385
        %v616 = vunpack.c.l.b16 %v386
        %v617 = vunpack.c.l.b16 %v387
        %v618 = vunpack.c.l.b16 %v388
        %v619 = vunpack.c.l.b16 %v389
        %v620 = vunpack.c.l.b16 %v390
        %v621 = vunpack.c.l.b16 %v391
        %v622 = vunpack.c.l.b16 %v392
        %v623 = vunpack.c.l.b16 %v393
        %v624 = vunpack.c.l.b16 %v394
        %v625 = vunpack.c.l.b16 %v395
        %v626 = vunpack.c.l.b16 %v396
        %v627 = vunpack.c.l.b16 %v397
        %v628 = vunpack.c.l.b16 %v398
        %v629 = vunpack.c.l.b16 %v399
        %v630 = vunpack.c.l.b16 %v400
        %v631 = vunpack.c.l.b16 %v401
        %v632 = vunpack.c.l.b16 %v402
        %v633 = vunpack.c.l.b16 %v403
        %v634 = vunpack.c.l.b16 %v404
        %v635 = vunpack.c.l.b16 %v405
        %v636 = vunpack.c.l.b16 %v406
        %v637 = vunpack.c.l.b16 %v407
        %v638 = vunpack.c.l.b16 %v408
        %v639 = vunpack.c.l.b16 %v409
        %v640 = vunpack.c.l.b16 %v410
        %v641 = vunpack.c.l.b16 %v411
        %v642 = vpack.c.b16 %v611, %v610
        %v643 = vpack.c.b16 %v613, %v612
        %v644 = vpack.c.b16 %v615, %v614
        %v645 = vpack.c.b16 %v617, %v616
        %v646 = vpack.c.b16 %v619, %v618
        %v647 = vpack.c.b16 %v621, %v620
        %v648 = vpack.c.b16 %v623, %v622
        %v649 = vpack.c.b16 %v625, %v624
        %v650 = vpack.c.b16 %v627, %v626
        %v651 = vpack.c.b16 %v629, %v628
        %v652 = vpack.c.b16 %v631, %v630
        %v653 = vpack.c.b16 %v633, %v632
        %v654 = vpack.c.b16 %v635, %v634
        %v655 = vpack.c.b16 %v637, %v636
        %v656 = vpack.c.b16 %v639, %v638
        %v657 = vpack.c.b16 %v641, %v640
        %674 = vmatprep.subr.bf16.mxu0 0
        %675 = vmatpush1.bf16.msra.mxu0 %v642
        %676 = vmatprep.subr.bf16.mxu0 0
        %677 = vmatpush1.bf16.msra.mxu0 %v643
        %678 = vmatprep.subr.bf16.mxu0 0
        %679 = vmatpush1.bf16.msra.mxu0 %v644
        %680 = vmatprep.subr.bf16.mxu0 0
        %681 = vmatpush1.bf16.msra.mxu0 %v645
        %682 = vmatprep.subr.bf16.mxu0 0
        %683 = vmatpush1.bf16.msra.mxu0 %v646
        %684 = vmatprep.subr.bf16.mxu0 0
        %685 = vmatpush1.bf16.msra.mxu0 %v647
        %686 = vmatprep.subr.bf16.mxu0 0
        %687 = vmatpush1.bf16.msra.mxu0 %v648
        %688 = vmatprep.subr.bf16.mxu0 0
        %689 = vmatpush1.bf16.msra.mxu0 %v649
        %690 = vmatprep.subr.bf16.mxu0 0
        %691 = vmatpush1.bf16.msra.mxu0 %v650
        %692 = vmatprep.subr.bf16.mxu0 0
        %693 = vmatpush1.bf16.msra.mxu0 %v651
        %694 = vmatprep.subr.bf16.mxu0 0
        %695 = vmatpush1.bf16.msra.mxu0 %v652
        %696 = vmatprep.subr.bf16.mxu0 0
        %697 = vmatpush1.bf16.msra.mxu0 %v653
        %698 = vmatprep.subr.bf16.mxu0 0
        %699 = vmatpush1.bf16.msra.mxu0 %v654
        %700 = vmatprep.subr.bf16.mxu0 0
        %701 = vmatpush1.bf16.msra.mxu0 %v655
        %702 = vmatprep.subr.bf16.mxu0 0
        %703 = vmatpush1.bf16.msra.mxu0 %v656
        %704 = vmatprep.subr.bf16.mxu0 0
        %705 = vmatpush1.bf16.msra.mxu0 %v657
        %706 = vmatprep.mubr.bf16.mxu0 %v515
        %707 = vmatmul.mubr.bf16.gmra.mrb[0].mxu0 %v514
        %v708 = vpop.f32.mrb[0].mxu0
        %v709 = vadd.f32 %v416, %v708
        %v710 = vpop.f32.mrb[0].mxu0
        %v711 = vpop.f32.mrb[0].mxu0
        %v712 = vadd.f32 %v416, %v711
        %v713 = vpop.f32.mrb[0].mxu0
        %714 = vmatprep.mubr.bf16.mxu0 %v517
        %715 = vmatmul.mubr.bf16.gmra.mrb[0].mxu0 %v516
        %v716 = vpop.f32.mrb[0].mxu0
        %v717 = vadd.f32 %v416, %v716
        %v718 = vpop.f32.mrb[0].mxu0
        %v719 = vpop.f32.mrb[0].mxu0
        %v720 = vadd.f32 %v416, %v719
        %v721 = vpop.f32.mrb[0].mxu0
        %722 = vmatprep.mubr.bf16.mxu0 %v519
        %723 = vmatmul.mubr.bf16.gmra.mrb[0].mxu0 %v518
        %v724 = vpop.f32.mrb[0].mxu0
        %v725 = vadd.f32 %v416, %v724
        %v726 = vpop.f32.mrb[0].mxu0
        %v727 = vpop.f32.mrb[0].mxu0
        %v728 = vadd.f32 %v416, %v727
        %v729 = vpop.f32.mrb[0].mxu0
        %730 = vmatprep.mubr.bf16.mxu0 %v521
        %731 = vmatmul.mubr.bf16.gmra.mrb[0].mxu0 %v520
        %v732 = vpop.f32.mrb[0].mxu0
        %v733 = vadd.f32 %v416, %v732
        %v734 = vpop.f32.mrb[0].mxu0
        %v735 = vpop.f32.mrb[0].mxu0
        %v736 = vadd.f32 %v416, %v735
        %v737 = vpop.f32.mrb[0].mxu0
        %738 = vmatprep.mubr.bf16.mxu0 %v523
        %739 = vmatmul.mubr.bf16.gmra.mrb[0].mxu0 %v522
        %v740 = vpop.f32.mrb[0].mxu0
        %v741 = vadd.f32 %v416, %v740
        %v742 = vpop.f32.mrb[0].mxu0
        %v743 = vpop.f32.mrb[0].mxu0
        %v744 = vadd.f32 %v416, %v743
        %v745 = vpop.f32.mrb[0].mxu0
        %746 = vmatprep.mubr.bf16.mxu0 %v525
        %747 = vmatmul.mubr.bf16.gmra.mrb[0].mxu0 %v524
        %v748 = vpop.f32.mrb[0].mxu0
        %v749 = vadd.f32 %v416, %v748
        %v750 = vpop.f32.mrb[0].mxu0
        %v751 = vpop.f32.mrb[0].mxu0
        %v752 = vadd.f32 %v416, %v751
        %v753 = vpop.f32.mrb[0].mxu0
        %754 = vmatprep.mubr.bf16.mxu0 %v527
        %755 = vmatmul.mubr.bf16.gmra.mrb[0].mxu0 %v526
        %v756 = vpop.f32.mrb[0].mxu0
        %v757 = vadd.f32 %v416, %v756
        %v758 = vpop.f32.mrb[0].mxu0
        %v759 = vpop.f32.mrb[0].mxu0
        %v760 = vadd.f32 %v416, %v759
        %v761 = vpop.f32.mrb[0].mxu0
        %762 = vmatprep.mubr.bf16.mxu0 %v529
        %763 = vmatmul.mubr.bf16.gmra.mrb[0].mxu0 %v528
        %v764 = vpop.f32.mrb[0].mxu0
        %v765 = vadd.f32 %v416, %v764
        %v766 = vpop.f32.mrb[0].mxu0
        %v767 = vpop.f32.mrb[0].mxu0
        %v768 = vadd.f32 %v416, %v767
        %v769 = vpop.f32.mrb[0].mxu0
        %770 = vmatprep.mubr.bf16.mxu0 %v531
        %771 = vmatmul.mubr.bf16.gmra.mrb[0].mxu0 %v530
        %v772 = vpop.f32.mrb[0].mxu0
        %v773 = vadd.f32 %v416, %v772
        %v774 = vpop.f32.mrb[0].mxu0
        %v775 = vpop.f32.mrb[0].mxu0
        %v776 = vadd.f32 %v416, %v775
        %v777 = vpop.f32.mrb[0].mxu0
        %778 = vmatprep.mubr.bf16.mxu0 %v533
        %779 = vmatmul.mubr.bf16.gmra.mrb[0].mxu0 %v532
        %v780 = vpop.f32.mrb[0].mxu0
        %v781 = vadd.f32 %v416, %v780
        %v782 = vpop.f32.mrb[0].mxu0
        %v783 = vpop.f32.mrb[0].mxu0
        %v784 = vadd.f32 %v416, %v783
        %v785 = vpop.f32.mrb[0].mxu0
        %786 = vmatprep.mubr.bf16.mxu0 %v535
        %787 = vmatmul.mubr.bf16.gmra.mrb[0].mxu0 %v534
        %v788 = vpop.f32.mrb[0].mxu0
        %v789 = vadd.f32 %v416, %v788
        %v790 = vpop.f32.mrb[0].mxu0
        %v791 = vpop.f32.mrb[0].mxu0
        %v792 = vadd.f32 %v416, %v791
        %v793 = vpop.f32.mrb[0].mxu0
        %794 = vmatprep.mubr.bf16.mxu0 %v537
        %795 = vmatmul.mubr.bf16.gmra.mrb[0].mxu0 %v536
        %v796 = vpop.f32.mrb[0].mxu0
        %v797 = vadd.f32 %v416, %v796
        %v798 = vpop.f32.mrb[0].mxu0
        %v799 = vpop.f32.mrb[0].mxu0
        %v800 = vadd.f32 %v416, %v799
        %v801 = vpop.f32.mrb[0].mxu0
        %802 = vmatprep.mubr.bf16.mxu0 %v539
        %803 = vmatmul.mubr.bf16.gmra.mrb[0].mxu0 %v538
        %v804 = vpop.f32.mrb[0].mxu0
        %v805 = vadd.f32 %v416, %v804
        %v806 = vpop.f32.mrb[0].mxu0
        %v807 = vpop.f32.mrb[0].mxu0
        %v808 = vadd.f32 %v416, %v807
        %v809 = vpop.f32.mrb[0].mxu0
        %810 = vmatprep.mubr.bf16.mxu0 %v541
        %811 = vmatmul.mubr.bf16.gmra.mrb[0].mxu0 %v540
        %v812 = vpop.f32.mrb[0].mxu0
        %v813 = vadd.f32 %v416, %v812
        %v814 = vpop.f32.mrb[0].mxu0
        %v815 = vpop.f32.mrb[0].mxu0
        %v816 = vadd.f32 %v416, %v815
        %v817 = vpop.f32.mrb[0].mxu0
        %818 = vmatprep.mubr.bf16.mxu0 %v543
        %819 = vmatmul.mubr.bf16.gmra.mrb[0].mxu0 %v542
        %v820 = vpop.f32.mrb[0].mxu0
        %v821 = vadd.f32 %v416, %v820
        %v822 = vpop.f32.mrb[0].mxu0
        %v823 = vpop.f32.mrb[0].mxu0
        %v824 = vadd.f32 %v416, %v823
        %v825 = vpop.f32.mrb[0].mxu0
        %826 = vmatprep.mubr.bf16.mxu0 %v545
        %827 = vmatmul.mubr.bf16.gmra.mrb[0].mxu0 %v544
        %v828 = vpop.f32.mrb[0].mxu0
        %v829 = vadd.f32 %v416, %v828
        %v830 = vpop.f32.mrb[0].mxu0
        %v831 = vpop.f32.mrb[0].mxu0
        %v832 = vadd.f32 %v416, %v831
        %v833 = vpop.f32.mrb[0].mxu0
        %834 = vdwg.mxu0
        %v835 = vmax.f32 %v709, 0.0
        %v836 = vmax.f32 %v712, 0.0
        %v837 = vmax.f32 %v717, 0.0
        %v838 = vmax.f32 %v720, 0.0
        %v839 = vmax.f32 %v725, 0.0
        %v840 = vmax.f32 %v728, 0.0
        %v841 = vmax.f32 %v733, 0.0
        %v842 = vmax.f32 %v736, 0.0
        %v843 = vmax.f32 %v741, 0.0
        %v844 = vmax.f32 %v744, 0.0
        %v845 = vmax.f32 %v749, 0.0
        %v846 = vmax.f32 %v752, 0.0
        %v847 = vmax.f32 %v757, 0.0
        %v848 = vmax.f32 %v760, 0.0
        %v849 = vmax.f32 %v765, 0.0
        %v850 = vmax.f32 %v768, 0.0
        %v851 = vmax.f32 %v773, 0.0
        %v852 = vmax.f32 %v776, 0.0
        %v853 = vmax.f32 %v781, 0.0
        %v854 = vmax.f32 %v784, 0.0
        %v855 = vmax.f32 %v789, 0.0
        %v856 = vmax.f32 %v792, 0.0
        %v857 = vmax.f32 %v797, 0.0
        %v858 = vmax.f32 %v800, 0.0
        %v859 = vmax.f32 %v805, 0.0
        %v860 = vmax.f32 %v808, 0.0
        %v861 = vmax.f32 %v813, 0.0
        %v862 = vmax.f32 %v816, 0.0
        %v863 = vmax.f32 %v821, 0.0
        %v864 = vmax.f32 %v824, 0.0
        %v865 = vmax.f32 %v829, 0.0
        %v866 = vmax.f32 %v832, 0.0
        %867 = vst [vmem:[#allocation2] sm:$0xff] %v835
        %868 = vst [vmem:[#allocation2 + $0x8] sm:$0xff] %v836
        %869 = vst [vmem:[#allocation2 + $0x10] sm:$0xff] %v837
        %870 = vst [vmem:[#allocation2 + $0x18] sm:$0xff] %v838
        %871 = vst [vmem:[#allocation2 + $0x20] sm:$0xff] %v839
        %872 = vst [vmem:[#allocation2 + $0x28] sm:$0xff] %v840
        %873 = vst [vmem:[#allocation2 + $0x30] sm:$0xff] %v841
        %874 = vst [vmem:[#allocation2 + $0x38] sm:$0xff] %v842
        %875 = vst [vmem:[#allocation2 + $0x40] sm:$0xff] %v843
        %876 = vst [vmem:[#allocation2 + $0x48] sm:$0xff] %v844
        %877 = vst [vmem:[#allocation2 + $0x50] sm:$0xff] %v845
        %878 = vst [vmem:[#allocation2 + $0x58] sm:$0xff] %v846
        %879 = vst [vmem:[#allocation2 + $0x60] sm:$0xff] %v847
        %880 = vst [vmem:[#allocation2 + $0x68] sm:$0xff] %v848
        %881 = vst [vmem:[#allocation2 + $0x70] sm:$0xff] %v849
        %882 = vst [vmem:[#allocation2 + $0x78] sm:$0xff] %v850
        %883 = vst [vmem:[#allocation2 + $0x80] sm:$0xff] %v851
        %884 = vst [vmem:[#allocation2 + $0x88] sm:$0xff] %v852
        %885 = vst [vmem:[#allocation2 + $0x90] sm:$0xff] %v853
        %886 = vst [vmem:[#allocation2 + $0x98] sm:$0xff] %v854
        %887 = vst [vmem:[#allocation2 + $0xa0] sm:$0xff] %v855
        %888 = vst [vmem:[#allocation2 + $0xa8] sm:$0xff] %v856
        %889 = vst [vmem:[#allocation2 + $0xb0] sm:$0xff] %v857
        %890 = vst [vmem:[#allocation2 + $0xb8] sm:$0xff] %v858
        %891 = vst [vmem:[#allocation2 + $0xc0] sm:$0xff] %v859
        %892 = vst [vmem:[#allocation2 + $0xc8] sm:$0xff] %v860
        %893 = vst [vmem:[#allocation2 + $0xd0] sm:$0xff] %v861
        %894 = vst [vmem:[#allocation2 + $0xd8] sm:$0xff] %v862
        %895 = vst [vmem:[#allocation2 + $0xe0] sm:$0xff] %v863
        %896 = vst [vmem:[#allocation2 + $0xe8] sm:$0xff] %v864
        %897 = vst [vmem:[#allocation2 + $0xf0] sm:$0xff] %v865
        %898 = vst [vmem:[#allocation2 + $0xf8] sm:$0xff] %v866
        %v899 = vld [vmem:[#allocation2] sm:$0xff]
        %v900 = vld [vmem:[#allocation2 + $0x8] sm:$0xff]
        %v901 = vld [vmem:[#allocation2 + $0x10] sm:$0xff]
        %v902 = vld [vmem:[#allocation2 + $0x18] sm:$0xff]
        %v903 = vld [vmem:[#allocation2 + $0x20] sm:$0xff]
        %v904 = vld [vmem:[#allocation2 + $0x28] sm:$0xff]
        %v905 = vld [vmem:[#allocation2 + $0x30] sm:$0xff]
        %v906 = vld [vmem:[#allocation2 + $0x38] sm:$0xff]
        %v907 = vld [vmem:[#allocation2 + $0x40] sm:$0xff]
        %v908 = vld [vmem:[#allocation2 + $0x48] sm:$0xff]
        %v909 = vld [vmem:[#allocation2 + $0x50] sm:$0xff]
        %v910 = vld [vmem:[#allocation2 + $0x58] sm:$0xff]
        %v911 = vld [vmem:[#allocation2 + $0x60] sm:$0xff]
        %v912 = vld [vmem:[#allocation2 + $0x68] sm:$0xff]
        %v913 = vld [vmem:[#allocation2 + $0x70] sm:$0xff]
        %v914 = vld [vmem:[#allocation2 + $0x78] sm:$0xff]
        %v915 = vld [vmem:[#allocation2 + $0x80] sm:$0xff]
        %v916 = vld [vmem:[#allocation2 + $0x88] sm:$0xff]
        %v917 = vld [vmem:[#allocation2 + $0x90] sm:$0xff]
        %v918 = vld [vmem:[#allocation2 + $0x98] sm:$0xff]
        %v919 = vld [vmem:[#allocation2 + $0xa0] sm:$0xff]
        %v920 = vld [vmem:[#allocation2 + $0xa8] sm:$0xff]
        %v921 = vld [vmem:[#allocation2 + $0xb0] sm:$0xff]
        %v922 = vld [vmem:[#allocation2 + $0xb8] sm:$0xff]
        %v923 = vld [vmem:[#allocation2 + $0xc0] sm:$0xff]
        %v924 = vld [vmem:[#allocation2 + $0xc8] sm:$0xff]
        %v925 = vld [vmem:[#allocation2 + $0xd0] sm:$0xff]
        %v926 = vld [vmem:[#allocation2 + $0xd8] sm:$0xff]
        %v927 = vld [vmem:[#allocation2 + $0xe0] sm:$0xff]
        %v928 = vld [vmem:[#allocation2 + $0xe8] sm:$0xff]
        %v929 = vld [vmem:[#allocation2 + $0xf0] sm:$0xff]
        %v930 = vld [vmem:[#allocation2 + $0xf8] sm:$0xff]
        %v931 = vpack.c.bf16 %v900, %v899
        %v932 = vpack.c.bf16 %v902, %v901
        %v933 = vpack.c.bf16 %v904, %v903
        %v934 = vpack.c.bf16 %v906, %v905
        %v935 = vpack.c.bf16 %v908, %v907
        %v936 = vpack.c.bf16 %v910, %v909
        %v937 = vpack.c.bf16 %v912, %v911
        %v938 = vpack.c.bf16 %v914, %v913
        %v939 = vpack.c.bf16 %v916, %v915
        %v940 = vpack.c.bf16 %v918, %v917
        %v941 = vpack.c.bf16 %v920, %v919
        %v942 = vpack.c.bf16 %v922, %v921
        %v943 = vpack.c.bf16 %v924, %v923
        %v944 = vpack.c.bf16 %v926, %v925
        %v945 = vpack.c.bf16 %v928, %v927
        %v946 = vpack.c.bf16 %v930, %v929
        %v947 = vld [vmem:[#allocation9] sm:$0xf]
        %v948 = vld [vmem:[#allocation9 + $0x4] sm:$0xf]
        %v949 = vld [vmem:[#allocation9 + $0x8] sm:$0xf]
        %v950 = vld [vmem:[#allocation9 + $0xc] sm:$0xf]
        %v951 = vld [vmem:[#allocation9 + $0x10] sm:$0xf]
        %v952 = vld [vmem:[#allocation9 + $0x14] sm:$0xf]
        %v953 = vld [vmem:[#allocation9 + $0x18] sm:$0xf]
        %v954 = vld [vmem:[#allocation9 + $0x1c] sm:$0xf]
        %v955 = vld [vmem:[#allocation9 + $0x20] sm:$0xf]
        %v956 = vld [vmem:[#allocation9 + $0x24] sm:$0xf]
        %v957 = vld [vmem:[#allocation9 + $0x28] sm:$0xf]
        %v958 = vld [vmem:[#allocation9 + $0x2c] sm:$0xf]
        %v959 = vld [vmem:[#allocation9 + $0x30] sm:$0xf]
        %v960 = vld [vmem:[#allocation9 + $0x34] sm:$0xf]
        %v961 = vld [vmem:[#allocation9 + $0x38] sm:$0xf]
        %v962 = vld [vmem:[#allocation9 + $0x3c] sm:$0xf]
        %v964 = vlaneseq
        %v965 = vshrl.u32 %v964, 7
        %v966 = vsub.s32 0, %v965
        %v967 = vrot.slane %v346, %v966
        %v985 = vunpack.c.l.b16 %v947
        %v986 = vunpack.c.l.b16 %v948
        %v987 = vunpack.c.l.b16 %v949
        %v988 = vunpack.c.l.b16 %v950
        %v989 = vunpack.c.l.b16 %v951
        %v990 = vunpack.c.l.b16 %v952
        %v991 = vunpack.c.l.b16 %v953
        %v992 = vunpack.c.l.b16 %v954
        %v993 = vunpack.c.l.b16 %v955
        %v994 = vunpack.c.l.b16 %v956
        %v995 = vunpack.c.l.b16 %v957
        %v996 = vunpack.c.l.b16 %v958
        %v997 = vunpack.c.l.b16 %v959
        %v998 = vunpack.c.l.b16 %v960
        %v999 = vunpack.c.l.b16 %v961
        %v1000 = vunpack.c.l.b16 %v962
        %v1001 = vpack.c.b16 %v986, %v985
        %v1002 = vpack.c.b16 %v988, %v987
        %v1003 = vpack.c.b16 %v990, %v989
        %v1004 = vpack.c.b16 %v992, %v991
        %v1005 = vpack.c.b16 %v994, %v993
        %v1006 = vpack.c.b16 %v996, %v995
        %v1007 = vpack.c.b16 %v998, %v997
        %v1008 = vpack.c.b16 %v1000, %v999
        %1017 = vmatprep.subr.bf16.mxu0 0
        %1018 = vmatpush1.bf16.msra.mxu0 %v1001
        %1019 = vmatprep.subr.bf16.mxu0 0
        %1020 = vmatpush1.bf16.msra.mxu0 %v1002
        %1021 = vmatprep.subr.bf16.mxu0 0
        %1022 = vmatpush1.bf16.msra.mxu0 %v1003
        %1023 = vmatprep.subr.bf16.mxu0 0
        %1024 = vmatpush1.bf16.msra.mxu0 %v1004
        %1025 = vmatprep.subr.bf16.mxu0 0
        %1026 = vmatpush1.bf16.msra.mxu0 %v1005
        %1027 = vmatprep.subr.bf16.mxu0 0
        %1028 = vmatpush1.bf16.msra.mxu0 %v1006
        %1029 = vmatprep.subr.bf16.mxu0 0
        %1030 = vmatpush1.bf16.msra.mxu0 %v1007
        %1031 = vmatprep.subr.bf16.mxu0 0
        %1032 = vmatpush1.bf16.msra.mxu0 %v1008
        %1033 = vmatprep.subr.bf16.mxu0 0
        %1034 = vmatpush1.bf16.msra.mxu0 0
        %1035 = vmatprep.subr.bf16.mxu0 0
        %1036 = vmatpush1.bf16.msra.mxu0 0
        %1037 = vmatprep.subr.bf16.mxu0 0
        %1038 = vmatpush1.bf16.msra.mxu0 0
        %1039 = vmatprep.subr.bf16.mxu0 0
        %1040 = vmatpush1.bf16.msra.mxu0 0
        %1041 = vmatprep.subr.bf16.mxu0 0
        %1042 = vmatpush1.bf16.msra.mxu0 0
        %1043 = vmatprep.subr.bf16.mxu0 0
        %1044 = vmatpush1.bf16.msra.mxu0 0
        %1045 = vmatprep.subr.bf16.mxu0 0
        %1046 = vmatpush1.bf16.msra.mxu0 0
        %1047 = vmatprep.subr.bf16.mxu0 0
        %1048 = vmatpush1.bf16.msra.mxu0 0
        %1049 = vmatprep.mubr.bf16.mxu0 0
        %1050 = vmatmul.mubr.bf16.gmra.mrb[0].mxu0 %v931
        %v1051 = vpop.f32.mrb[0].mxu0
        %v1052 = vadd.f32 %v967, %v1051
        %v1053 = vpop.f32.mrb[0].mxu0
        %v1054 = vpop.f32.mrb[0].mxu0
        %v1055 = vadd.f32 %v967, %v1054
        %v1056 = vpop.f32.mrb[0].mxu0
        %1057 = vmatprep.mubr.bf16.mxu0 0
        %1058 = vmatmul.mubr.bf16.gmra.mrb[0].mxu0 %v932
        %v1059 = vpop.f32.mrb[0].mxu0
        %v1060 = vadd.f32 %v967, %v1059
        %v1061 = vpop.f32.mrb[0].mxu0
        %v1062 = vpop.f32.mrb[0].mxu0
        %v1063 = vadd.f32 %v967, %v1062
        %v1064 = vpop.f32.mrb[0].mxu0
        %1065 = vmatprep.mubr.bf16.mxu0 0
        %1066 = vmatmul.mubr.bf16.gmra.mrb[0].mxu0 %v933
        %v1067 = vpop.f32.mrb[0].mxu0
        %v1068 = vadd.f32 %v967, %v1067
        %v1069 = vpop.f32.mrb[0].mxu0
        %v1070 = vpop.f32.mrb[0].mxu0
        %v1071 = vadd.f32 %v967, %v1070
        %v1072 = vpop.f32.mrb[0].mxu0
        %1073 = vmatprep.mubr.bf16.mxu0 0
        %1074 = vmatmul.mubr.bf16.gmra.mrb[0].mxu0 %v934
        %v1075 = vpop.f32.mrb[0].mxu0
        %v1076 = vadd.f32 %v967, %v1075
        %v1077 = vpop.f32.mrb[0].mxu0
        %v1078 = vpop.f32.mrb[0].mxu0
        %v1079 = vadd.f32 %v967, %v1078
        %v1080 = vpop.f32.mrb[0].mxu0
        %1081 = vmatprep.mubr.bf16.mxu0 0
        %1082 = vmatmul.mubr.bf16.gmra.mrb[0].mxu0 %v935
        %v1083 = vpop.f32.mrb[0].mxu0
        %v1084 = vadd.f32 %v967, %v1083
        %v1085 = vpop.f32.mrb[0].mxu0
        %v1086 = vpop.f32.mrb[0].mxu0
        %v1087 = vadd.f32 %v967, %v1086
        %v1088 = vpop.f32.mrb[0].mxu0
        %1089 = vmatprep.mubr.bf16.mxu0 0
        %1090 = vmatmul.mubr.bf16.gmra.mrb[0].mxu0 %v936
        %v1091 = vpop.f32.mrb[0].mxu0
        %v1092 = vadd.f32 %v967, %v1091
        %v1093 = vpop.f32.mrb[0].mxu0
        %v1094 = vpop.f32.mrb[0].mxu0
        %v1095 = vadd.f32 %v967, %v1094
        %v1096 = vpop.f32.mrb[0].mxu0
        %1097 = vmatprep.mubr.bf16.mxu0 0
        %1098 = vmatmul.mubr.bf16.gmra.mrb[0].mxu0 %v937
        %v1099 = vpop.f32.mrb[0].mxu0
        %v1100 = vadd.f32 %v967, %v1099
        %v1101 = vpop.f32.mrb[0].mxu0
        %v1102 = vpop.f32.mrb[0].mxu0
        %v1103 = vadd.f32 %v967, %v1102
        %v1104 = vpop.f32.mrb[0].mxu0
        %1105 = vmatprep.mubr.bf16.mxu0 0
        %1106 = vmatmul.mubr.bf16.gmra.mrb[0].mxu0 %v938
        %v1107 = vpop.f32.mrb[0].mxu0
        %v1108 = vadd.f32 %v967, %v1107
        %v1109 = vpop.f32.mrb[0].mxu0
        %v1110 = vpop.f32.mrb[0].mxu0
        %v1111 = vadd.f32 %v967, %v1110
        %v1112 = vpop.f32.mrb[0].mxu0
        %1113 = vmatprep.mubr.bf16.mxu0 0
        %1114 = vmatmul.mubr.bf16.gmra.mrb[0].mxu0 %v939
        %v1115 = vpop.f32.mrb[0].mxu0
        %v1116 = vadd.f32 %v967, %v1115
        %v1117 = vpop.f32.mrb[0].mxu0
        %v1118 = vpop.f32.mrb[0].mxu0
        %v1119 = vadd.f32 %v967, %v1118
        %v1120 = vpop.f32.mrb[0].mxu0
        %1121 = vmatprep.mubr.bf16.mxu0 0
        %1122 = vmatmul.mubr.bf16.gmra.mrb[0].mxu0 %v940
        %v1123 = vpop.f32.mrb[0].mxu0
        %v1124 = vadd.f32 %v967, %v1123
        %v1125 = vpop.f32.mrb[0].mxu0
        %v1126 = vpop.f32.mrb[0].mxu0
        %v1127 = vadd.f32 %v967, %v1126
        %v1128 = vpop.f32.mrb[0].mxu0
        %1129 = vmatprep.mubr.bf16.mxu0 0
        %1130 = vmatmul.mubr.bf16.gmra.mrb[0].mxu0 %v941
        %v1131 = vpop.f32.mrb[0].mxu0
        %v1132 = vadd.f32 %v967, %v1131
        %v1133 = vpop.f32.mrb[0].mxu0
        %v1134 = vpop.f32.mrb[0].mxu0
        %v1135 = vadd.f32 %v967, %v1134
        %v1136 = vpop.f32.mrb[0].mxu0
        %1137 = vmatprep.mubr.bf16.mxu0 0
        %1138 = vmatmul.mubr.bf16.gmra.mrb[0].mxu0 %v942
        %v1139 = vpop.f32.mrb[0].mxu0
        %v1140 = vadd.f32 %v967, %v1139
        %v1141 = vpop.f32.mrb[0].mxu0
        %v1142 = vpop.f32.mrb[0].mxu0
        %v1143 = vadd.f32 %v967, %v1142
        %v1144 = vpop.f32.mrb[0].mxu0
        %1145 = vmatprep.mubr.bf16.mxu0 0
        %1146 = vmatmul.mubr.bf16.gmra.mrb[0].mxu0 %v943
        %v1147 = vpop.f32.mrb[0].mxu0
        %v1148 = vadd.f32 %v967, %v1147
        %v1149 = vpop.f32.mrb[0].mxu0
        %v1150 = vpop.f32.mrb[0].mxu0
        %v1151 = vadd.f32 %v967, %v1150
        %v1152 = vpop.f32.mrb[0].mxu0
        %1153 = vmatprep.mubr.bf16.mxu0 0
        %1154 = vmatmul.mubr.bf16.gmra.mrb[0].mxu0 %v944
        %v1155 = vpop.f32.mrb[0].mxu0
        %v1156 = vadd.f32 %v967, %v1155
        %v1157 = vpop.f32.mrb[0].mxu0
        %v1158 = vpop.f32.mrb[0].mxu0
        %v1159 = vadd.f32 %v967, %v1158
        %v1160 = vpop.f32.mrb[0].mxu0
        %1161 = vmatprep.mubr.bf16.mxu0 0
        %1162 = vmatmul.mubr.bf16.gmra.mrb[0].mxu0 %v945
        %v1163 = vpop.f32.mrb[0].mxu0
        %v1164 = vadd.f32 %v967, %v1163
        %v1165 = vpop.f32.mrb[0].mxu0
        %v1166 = vpop.f32.mrb[0].mxu0
        %v1167 = vadd.f32 %v967, %v1166
        %v1168 = vpop.f32.mrb[0].mxu0
        %1169 = vmatprep.mubr.bf16.mxu0 0
        %1170 = vmatmul.mubr.bf16.gmra.mrb[0].mxu0 %v946
        %v1171 = vpop.f32.mrb[0].mxu0
        %v1172 = vadd.f32 %v967, %v1171
        %v1173 = vpop.f32.mrb[0].mxu0
        %v1174 = vpop.f32.mrb[0].mxu0
        %v1175 = vadd.f32 %v967, %v1174
        %v1176 = vpop.f32.mrb[0].mxu0
        %1177 = vdwg.mxu0
        %v1178 = vmax.f32 %v1052, 0.0
        %v1179 = vmax.f32 %v1055, 0.0
        %v1180 = vmax.f32 %v1060, 0.0
        %v1181 = vmax.f32 %v1063, 0.0
        %v1182 = vmax.f32 %v1068, 0.0
        %v1183 = vmax.f32 %v1071, 0.0
        %v1184 = vmax.f32 %v1076, 0.0
        %v1185 = vmax.f32 %v1079, 0.0
        %v1186 = vmax.f32 %v1084, 0.0
        %v1187 = vmax.f32 %v1087, 0.0
        %v1188 = vmax.f32 %v1092, 0.0
        %v1189 = vmax.f32 %v1095, 0.0
        %v1190 = vmax.f32 %v1100, 0.0
        %v1191 = vmax.f32 %v1103, 0.0
        %v1192 = vmax.f32 %v1108, 0.0
        %v1193 = vmax.f32 %v1111, 0.0
        %v1194 = vmax.f32 %v1116, 0.0
        %v1195 = vmax.f32 %v1119, 0.0
        %v1196 = vmax.f32 %v1124, 0.0
        %v1197 = vmax.f32 %v1127, 0.0
        %v1198 = vmax.f32 %v1132, 0.0
        %v1199 = vmax.f32 %v1135, 0.0
        %v1200 = vmax.f32 %v1140, 0.0
        %v1201 = vmax.f32 %v1143, 0.0
        %v1202 = vmax.f32 %v1148, 0.0
        %v1203 = vmax.f32 %v1151, 0.0
        %v1204 = vmax.f32 %v1156, 0.0
        %v1205 = vmax.f32 %v1159, 0.0
        %v1206 = vmax.f32 %v1164, 0.0
        %v1207 = vmax.f32 %v1167, 0.0
        %v1208 = vmax.f32 %v1172, 0.0
        %v1209 = vmax.f32 %v1175, 0.0
        %1210 = vst [vmem:[#allocation3] sm:$0xff] %v1178
        %1211 = vst [vmem:[#allocation3 + $0x8] sm:$0xff] %v1179
        %1212 = vst [vmem:[#allocation3 + $0x10] sm:$0xff] %v1180
        %1213 = vst [vmem:[#allocation3 + $0x18] sm:$0xff] %v1181
        %1214 = vst [vmem:[#allocation3 + $0x20] sm:$0xff] %v1182
        %1215 = vst [vmem:[#allocation3 + $0x28] sm:$0xff] %v1183
        %1216 = vst [vmem:[#allocation3 + $0x30] sm:$0xff] %v1184
        %1217 = vst [vmem:[#allocation3 + $0x38] sm:$0xff] %v1185
        %1218 = vst [vmem:[#allocation3 + $0x40] sm:$0xff] %v1186
        %1219 = vst [vmem:[#allocation3 + $0x48] sm:$0xff] %v1187
        %1220 = vst [vmem:[#allocation3 + $0x50] sm:$0xff] %v1188
        %1221 = vst [vmem:[#allocation3 + $0x58] sm:$0xff] %v1189
        %1222 = vst [vmem:[#allocation3 + $0x60] sm:$0xff] %v1190
        %1223 = vst [vmem:[#allocation3 + $0x68] sm:$0xff] %v1191
        %1224 = vst [vmem:[#allocation3 + $0x70] sm:$0xff] %v1192
        %1225 = vst [vmem:[#allocation3 + $0x78] sm:$0xff] %v1193
        %1226 = vst [vmem:[#allocation3 + $0x80] sm:$0xff] %v1194
        %1227 = vst [vmem:[#allocation3 + $0x88] sm:$0xff] %v1195
        %1228 = vst [vmem:[#allocation3 + $0x90] sm:$0xff] %v1196
        %1229 = vst [vmem:[#allocation3 + $0x98] sm:$0xff] %v1197
        %1230 = vst [vmem:[#allocation3 + $0xa0] sm:$0xff] %v1198
        %1231 = vst [vmem:[#allocation3 + $0xa8] sm:$0xff] %v1199
        %1232 = vst [vmem:[#allocation3 + $0xb0] sm:$0xff] %v1200
        %1233 = vst [vmem:[#allocation3 + $0xb8] sm:$0xff] %v1201
        %1234 = vst [vmem:[#allocation3 + $0xc0] sm:$0xff] %v1202
        %1235 = vst [vmem:[#allocation3 + $0xc8] sm:$0xff] %v1203
        %1236 = vst [vmem:[#allocation3 + $0xd0] sm:$0xff] %v1204
        %1237 = vst [vmem:[#allocation3 + $0xd8] sm:$0xff] %v1205
        %1238 = vst [vmem:[#allocation3 + $0xe0] sm:$0xff] %v1206
        %1239 = vst [vmem:[#allocation3 + $0xe8] sm:$0xff] %v1207
        %1240 = vst [vmem:[#allocation3 + $0xf0] sm:$0xff] %v1208
        %1241 = vst [vmem:[#allocation3 + $0xf8] sm:$0xff] %v1209
        %v1242 = vld [vmem:[#allocation3] sm:$0xff]
        %v1243 = vld [vmem:[#allocation3 + $0x8] sm:$0xff]
        %v1244 = vld [vmem:[#allocation3 + $0x10] sm:$0xff]
        %v1245 = vld [vmem:[#allocation3 + $0x18] sm:$0xff]
        %v1246 = vld [vmem:[#allocation3 + $0x20] sm:$0xff]
        %v1247 = vld [vmem:[#allocation3 + $0x28] sm:$0xff]
        %v1248 = vld [vmem:[#allocation3 + $0x30] sm:$0xff]
        %v1249 = vld [vmem:[#allocation3 + $0x38] sm:$0xff]
        %v1250 = vld [vmem:[#allocation3 + $0x40] sm:$0xff]
        %v1251 = vld [vmem:[#allocation3 + $0x48] sm:$0xff]
        %v1252 = vld [vmem:[#allocation3 + $0x50] sm:$0xff]
        %v1253 = vld [vmem:[#allocation3 + $0x58] sm:$0xff]
        %v1254 = vld [vmem:[#allocation3 + $0x60] sm:$0xff]
        %v1255 = vld [vmem:[#allocation3 + $0x68] sm:$0xff]
        %v1256 = vld [vmem:[#allocation3 + $0x70] sm:$0xff]
        %v1257 = vld [vmem:[#allocation3 + $0x78] sm:$0xff]
        %v1258 = vld [vmem:[#allocation3 + $0x80] sm:$0xff]
        %v1259 = vld [vmem:[#allocation3 + $0x88] sm:$0xff]
        %v1260 = vld [vmem:[#allocation3 + $0x90] sm:$0xff]
        %v1261 = vld [vmem:[#allocation3 + $0x98] sm:$0xff]
        %v1262 = vld [vmem:[#allocation3 + $0xa0] sm:$0xff]
        %v1263 = vld [vmem:[#allocation3 + $0xa8] sm:$0xff]
        %v1264 = vld [vmem:[#allocation3 + $0xb0] sm:$0xff]
        %v1265 = vld [vmem:[#allocation3 + $0xb8] sm:$0xff]
        %v1266 = vld [vmem:[#allocation3 + $0xc0] sm:$0xff]
        %v1267 = vld [vmem:[#allocation3 + $0xc8] sm:$0xff]
        %v1268 = vld [vmem:[#allocation3 + $0xd0] sm:$0xff]
        %v1269 = vld [vmem:[#allocation3 + $0xd8] sm:$0xff]
        %v1270 = vld [vmem:[#allocation3 + $0xe0] sm:$0xff]
        %v1271 = vld [vmem:[#allocation3 + $0xe8] sm:$0xff]
        %v1272 = vld [vmem:[#allocation3 + $0xf0] sm:$0xff]
        %v1273 = vld [vmem:[#allocation3 + $0xf8] sm:$0xff]
        %v1274 = vpack.c.bf16 %v1243, %v1242
        %v1275 = vpack.c.bf16 %v1245, %v1244
        %v1276 = vpack.c.bf16 %v1247, %v1246
        %v1277 = vpack.c.bf16 %v1249, %v1248
        %v1278 = vpack.c.bf16 %v1251, %v1250
        %v1279 = vpack.c.bf16 %v1253, %v1252
        %v1280 = vpack.c.bf16 %v1255, %v1254
        %v1281 = vpack.c.bf16 %v1257, %v1256
        %v1282 = vpack.c.bf16 %v1259, %v1258
        %v1283 = vpack.c.bf16 %v1261, %v1260
        %v1284 = vpack.c.bf16 %v1263, %v1262
        %v1285 = vpack.c.bf16 %v1265, %v1264
        %v1286 = vpack.c.bf16 %v1267, %v1266
        %v1287 = vpack.c.bf16 %v1269, %v1268
        %v1288 = vpack.c.bf16 %v1271, %v1270
        %v1289 = vpack.c.bf16 %v1273, %v1272
        %v1290 = vld [vmem:[#allocation10] sm:$0xf]
        %v1291 = vld [vmem:[#allocation10 + $0x4] sm:$0xf]
        %v1292 = vld [vmem:[#allocation10 + $0x8] sm:$0xf]
        %v1293 = vld [vmem:[#allocation10 + $0xc] sm:$0xf]
        %v1294 = vld [vmem:[#allocation10 + $0x10] sm:$0xf]
        %v1295 = vld [vmem:[#allocation10 + $0x14] sm:$0xf]
        %v1296 = vld [vmem:[#allocation10 + $0x18] sm:$0xf]
        %v1297 = vld [vmem:[#allocation10 + $0x1c] sm:$0xf]
        %v1298 = vld [vmem:[#allocation10 + $0x20] sm:$0xf]
        %v1299 = vld [vmem:[#allocation10 + $0x24] sm:$0xf]
        %v1300 = vld [vmem:[#allocation10 + $0x28] sm:$0xf]
        %v1301 = vld [vmem:[#allocation10 + $0x2c] sm:$0xf]
        %v1302 = vld [vmem:[#allocation10 + $0x30] sm:$0xf]
        %v1303 = vld [vmem:[#allocation10 + $0x34] sm:$0xf]
        %v1304 = vld [vmem:[#allocation10 + $0x38] sm:$0xf]
        %v1305 = vld [vmem:[#allocation10 + $0x3c] sm:$0xf]
        %v1307 = vlaneseq
        %v1308 = vshrl.u32 %v1307, 7
        %v1309 = vsub.s32 0, %v1308
        %v1310 = vrot.slane %v347, %v1309
        %v1328 = vunpack.c.l.b16 %v1290
        %v1329 = vunpack.c.l.b16 %v1291
        %v1330 = vunpack.c.l.b16 %v1292
        %v1331 = vunpack.c.l.b16 %v1293
        %v1332 = vunpack.c.l.b16 %v1294
        %v1333 = vunpack.c.l.b16 %v1295
        %v1334 = vunpack.c.l.b16 %v1296
        %v1335 = vunpack.c.l.b16 %v1297
        %v1336 = vunpack.c.l.b16 %v1298
        %v1337 = vunpack.c.l.b16 %v1299
        %v1338 = vunpack.c.l.b16 %v1300
        %v1339 = vunpack.c.l.b16 %v1301
        %v1340 = vunpack.c.l.b16 %v1302
        %v1341 = vunpack.c.l.b16 %v1303
        %v1342 = vunpack.c.l.b16 %v1304
        %v1343 = vunpack.c.l.b16 %v1305
        %v1344 = vpack.c.b16 %v1329, %v1328
        %v1345 = vpack.c.b16 %v1331, %v1330
        %v1346 = vpack.c.b16 %v1333, %v1332
        %v1347 = vpack.c.b16 %v1335, %v1334
        %v1348 = vpack.c.b16 %v1337, %v1336
        %v1349 = vpack.c.b16 %v1339, %v1338
        %v1350 = vpack.c.b16 %v1341, %v1340
        %v1351 = vpack.c.b16 %v1343, %v1342
        %1360 = vmatprep.subr.bf16.mxu0 0
        %1361 = vmatpush1.bf16.msra.mxu0 %v1344
        %1362 = vmatprep.subr.bf16.mxu0 0
        %1363 = vmatpush1.bf16.msra.mxu0 %v1345
        %1364 = vmatprep.subr.bf16.mxu0 0
        %1365 = vmatpush1.bf16.msra.mxu0 %v1346
        %1366 = vmatprep.subr.bf16.mxu0 0
        %1367 = vmatpush1.bf16.msra.mxu0 %v1347
        %1368 = vmatprep.subr.bf16.mxu0 0
        %1369 = vmatpush1.bf16.msra.mxu0 %v1348
        %1370 = vmatprep.subr.bf16.mxu0 0
        %1371 = vmatpush1.bf16.msra.mxu0 %v1349
        %1372 = vmatprep.subr.bf16.mxu0 0
        %1373 = vmatpush1.bf16.msra.mxu0 %v1350
        %1374 = vmatprep.subr.bf16.mxu0 0
        %1375 = vmatpush1.bf16.msra.mxu0 %v1351
        %1376 = vmatprep.subr.bf16.mxu0 0
        %1377 = vmatpush1.bf16.msra.mxu0 0
        %1378 = vmatprep.subr.bf16.mxu0 0
        %1379 = vmatpush1.bf16.msra.mxu0 0
        %1380 = vmatprep.subr.bf16.mxu0 0
        %1381 = vmatpush1.bf16.msra.mxu0 0
        %1382 = vmatprep.subr.bf16.mxu0 0
        %1383 = vmatpush1.bf16.msra.mxu0 0
        %1384 = vmatprep.subr.bf16.mxu0 0
        %1385 = vmatpush1.bf16.msra.mxu0 0
        %1386 = vmatprep.subr.bf16.mxu0 0
        %1387 = vmatpush1.bf16.msra.mxu0 0
        %1388 = vmatprep.subr.bf16.mxu0 0
        %1389 = vmatpush1.bf16.msra.mxu0 0
        %1390 = vmatprep.subr.bf16.mxu0 0
        %1391 = vmatpush1.bf16.msra.mxu0 0
        %1392 = vmatprep.mubr.bf16.mxu0 0
        %1393 = vmatmul.mubr.bf16.gmra.mrb[0].mxu0 %v1274
        %v1394 = vpop.f32.mrb[0].mxu0
        %v1395 = vadd.f32 %v1310, %v1394
        %v1396 = vpop.f32.mrb[0].mxu0
        %v1397 = vpop.f32.mrb[0].mxu0
        %v1398 = vadd.f32 %v1310, %v1397
        %v1399 = vpop.f32.mrb[0].mxu0
        %1400 = vmatprep.mubr.bf16.mxu0 0
        %1401 = vmatmul.mubr.bf16.gmra.mrb[0].mxu0 %v1275
        %v1402 = vpop.f32.mrb[0].mxu0
        %v1403 = vadd.f32 %v1310, %v1402
        %v1404 = vpop.f32.mrb[0].mxu0
        %v1405 = vpop.f32.mrb[0].mxu0
        %v1406 = vadd.f32 %v1310, %v1405
        %v1407 = vpop.f32.mrb[0].mxu0
        %1408 = vmatprep.mubr.bf16.mxu0 0
        %1409 = vmatmul.mubr.bf16.gmra.mrb[0].mxu0 %v1276
        %v1410 = vpop.f32.mrb[0].mxu0
        %v1411 = vadd.f32 %v1310, %v1410
        %v1412 = vpop.f32.mrb[0].mxu0
        %v1413 = vpop.f32.mrb[0].mxu0
        %v1414 = vadd.f32 %v1310, %v1413
        %v1415 = vpop.f32.mrb[0].mxu0
        %1416 = vmatprep.mubr.bf16.mxu0 0
        %1417 = vmatmul.mubr.bf16.gmra.mrb[0].mxu0 %v1277
        %v1418 = vpop.f32.mrb[0].mxu0
        %v1419 = vadd.f32 %v1310, %v1418
        %v1420 = vpop.f32.mrb[0].mxu0
        %v1421 = vpop.f32.mrb[0].mxu0
        %v1422 = vadd.f32 %v1310, %v1421
        %v1423 = vpop.f32.mrb[0].mxu0
        %1424 = vmatprep.mubr.bf16.mxu0 0
        %1425 = vmatmul.mubr.bf16.gmra.mrb[0].mxu0 %v1278
        %v1426 = vpop.f32.mrb[0].mxu0
        %v1427 = vadd.f32 %v1310, %v1426
        %v1428 = vpop.f32.mrb[0].mxu0
        %v1429 = vpop.f32.mrb[0].mxu0
        %v1430 = vadd.f32 %v1310, %v1429
        %v1431 = vpop.f32.mrb[0].mxu0
        %1432 = vmatprep.mubr.bf16.mxu0 0
        %1433 = vmatmul.mubr.bf16.gmra.mrb[0].mxu0 %v1279
        %v1434 = vpop.f32.mrb[0].mxu0
        %v1435 = vadd.f32 %v1310, %v1434
        %v1436 = vpop.f32.mrb[0].mxu0
        %v1437 = vpop.f32.mrb[0].mxu0
        %v1438 = vadd.f32 %v1310, %v1437
        %v1439 = vpop.f32.mrb[0].mxu0
        %1440 = vmatprep.mubr.bf16.mxu0 0
        %1441 = vmatmul.mubr.bf16.gmra.mrb[0].mxu0 %v1280
        %v1442 = vpop.f32.mrb[0].mxu0
        %v1443 = vadd.f32 %v1310, %v1442
        %v1444 = vpop.f32.mrb[0].mxu0
        %v1445 = vpop.f32.mrb[0].mxu0
        %v1446 = vadd.f32 %v1310, %v1445
        %v1447 = vpop.f32.mrb[0].mxu0
        %1448 = vmatprep.mubr.bf16.mxu0 0
        %1449 = vmatmul.mubr.bf16.gmra.mrb[0].mxu0 %v1281
        %v1450 = vpop.f32.mrb[0].mxu0
        %v1451 = vadd.f32 %v1310, %v1450
        %v1452 = vpop.f32.mrb[0].mxu0
        %v1453 = vpop.f32.mrb[0].mxu0
        %v1454 = vadd.f32 %v1310, %v1453
        %v1455 = vpop.f32.mrb[0].mxu0
        %1456 = vmatprep.mubr.bf16.mxu0 0
        %1457 = vmatmul.mubr.bf16.gmra.mrb[0].mxu0 %v1282
        %v1458 = vpop.f32.mrb[0].mxu0
        %v1459 = vadd.f32 %v1310, %v1458
        %v1460 = vpop.f32.mrb[0].mxu0
        %v1461 = vpop.f32.mrb[0].mxu0
        %v1462 = vadd.f32 %v1310, %v1461
        %v1463 = vpop.f32.mrb[0].mxu0
        %1464 = vmatprep.mubr.bf16.mxu0 0
        %1465 = vmatmul.mubr.bf16.gmra.mrb[0].mxu0 %v1283
        %v1466 = vpop.f32.mrb[0].mxu0
        %v1467 = vadd.f32 %v1310, %v1466
        %v1468 = vpop.f32.mrb[0].mxu0
        %v1469 = vpop.f32.mrb[0].mxu0
        %v1470 = vadd.f32 %v1310, %v1469
        %v1471 = vpop.f32.mrb[0].mxu0
        %1472 = vmatprep.mubr.bf16.mxu0 0
        %1473 = vmatmul.mubr.bf16.gmra.mrb[0].mxu0 %v1284
        %v1474 = vpop.f32.mrb[0].mxu0
        %v1475 = vadd.f32 %v1310, %v1474
        %v1476 = vpop.f32.mrb[0].mxu0
        %v1477 = vpop.f32.mrb[0].mxu0
        %v1478 = vadd.f32 %v1310, %v1477
        %v1479 = vpop.f32.mrb[0].mxu0
        %1480 = vmatprep.mubr.bf16.mxu0 0
        %1481 = vmatmul.mubr.bf16.gmra.mrb[0].mxu0 %v1285
        %v1482 = vpop.f32.mrb[0].mxu0
        %v1483 = vadd.f32 %v1310, %v1482
        %v1484 = vpop.f32.mrb[0].mxu0
        %v1485 = vpop.f32.mrb[0].mxu0
        %v1486 = vadd.f32 %v1310, %v1485
        %v1487 = vpop.f32.mrb[0].mxu0
        %1488 = vmatprep.mubr.bf16.mxu0 0
        %1489 = vmatmul.mubr.bf16.gmra.mrb[0].mxu0 %v1286
        %v1490 = vpop.f32.mrb[0].mxu0
        %v1491 = vadd.f32 %v1310, %v1490
        %v1492 = vpop.f32.mrb[0].mxu0
        %v1493 = vpop.f32.mrb[0].mxu0
        %v1494 = vadd.f32 %v1310, %v1493
        %v1495 = vpop.f32.mrb[0].mxu0
        %1496 = vmatprep.mubr.bf16.mxu0 0
        %1497 = vmatmul.mubr.bf16.gmra.mrb[0].mxu0 %v1287
        %v1498 = vpop.f32.mrb[0].mxu0
        %v1499 = vadd.f32 %v1310, %v1498
        %v1500 = vpop.f32.mrb[0].mxu0
        %v1501 = vpop.f32.mrb[0].mxu0
        %v1502 = vadd.f32 %v1310, %v1501
        %v1503 = vpop.f32.mrb[0].mxu0
        %1504 = vmatprep.mubr.bf16.mxu0 0
        %1505 = vmatmul.mubr.bf16.gmra.mrb[0].mxu0 %v1288
        %v1506 = vpop.f32.mrb[0].mxu0
        %v1507 = vadd.f32 %v1310, %v1506
        %v1508 = vpop.f32.mrb[0].mxu0
        %v1509 = vpop.f32.mrb[0].mxu0
        %v1510 = vadd.f32 %v1310, %v1509
        %v1511 = vpop.f32.mrb[0].mxu0
        %1512 = vmatprep.mubr.bf16.mxu0 0
        %1513 = vmatmul.mubr.bf16.gmra.mrb[0].mxu0 %v1289
        %v1514 = vpop.f32.mrb[0].mxu0
        %v1515 = vadd.f32 %v1310, %v1514
        %v1516 = vpop.f32.mrb[0].mxu0
        %v1517 = vpop.f32.mrb[0].mxu0
        %v1518 = vadd.f32 %v1310, %v1517
        %v1519 = vpop.f32.mrb[0].mxu0
        %1520 = vdwg.mxu0
        %1521 = vst [vmem:[%s341] sm:$0xff] %v1395
        %1522 = vst [vmem:[%s341 + $0x8] sm:$0xff] %v1398
        %1523 = vst [vmem:[%s341 + $0x10] sm:$0xff] %v1403
        %1524 = vst [vmem:[%s341 + $0x18] sm:$0xff] %v1406
        %1525 = vst [vmem:[%s341 + $0x20] sm:$0xff] %v1411
        %1526 = vst [vmem:[%s341 + $0x28] sm:$0xff] %v1414
        %1527 = vst [vmem:[%s341 + $0x30] sm:$0xff] %v1419
        %1528 = vst [vmem:[%s341 + $0x38] sm:$0xff] %v1422
        %1529 = vst [vmem:[%s341 + $0x40] sm:$0xff] %v1427
        %1530 = vst [vmem:[%s341 + $0x48] sm:$0xff] %v1430
        %1531 = vst [vmem:[%s341 + $0x50] sm:$0xff] %v1435
        %1532 = vst [vmem:[%s341 + $0x58] sm:$0xff] %v1438
        %1533 = vst [vmem:[%s341 + $0x60] sm:$0xff] %v1443
        %1534 = vst [vmem:[%s341 + $0x68] sm:$0xff] %v1446
        %1535 = vst [vmem:[%s341 + $0x70] sm:$0xff] %v1451
        %1536 = vst [vmem:[%s341 + $0x78] sm:$0xff] %v1454
        %1537 = vst [vmem:[%s341 + $0x80] sm:$0xff] %v1459
        %1538 = vst [vmem:[%s341 + $0x88] sm:$0xff] %v1462
        %1539 = vst [vmem:[%s341 + $0x90] sm:$0xff] %v1467
        %1540 = vst [vmem:[%s341 + $0x98] sm:$0xff] %v1470
        %1541 = vst [vmem:[%s341 + $0xa0] sm:$0xff] %v1475
        %1542 = vst [vmem:[%s341 + $0xa8] sm:$0xff] %v1478
        %1543 = vst [vmem:[%s341 + $0xb0] sm:$0xff] %v1483
        %1544 = vst [vmem:[%s341 + $0xb8] sm:$0xff] %v1486
        %1545 = vst [vmem:[%s341 + $0xc0] sm:$0xff] %v1491
        %1546 = vst [vmem:[%s341 + $0xc8] sm:$0xff] %v1494
        %1547 = vst [vmem:[%s341 + $0xd0] sm:$0xff] %v1499
        %1548 = vst [vmem:[%s341 + $0xd8] sm:$0xff] %v1502
        %1549 = vst [vmem:[%s341 + $0xe0] sm:$0xff] %v1507
        %1550 = vst [vmem:[%s341 + $0xe8] sm:$0xff] %v1510
        %1551 = vst [vmem:[%s341 + $0xf0] sm:$0xff] %v1515
        %1552 = vst [vmem:[%s341 + $0xf8] sm:$0xff] %v1518
        %s1553 = sand.u32 %s186, 1
        %s1554 = scalar_lea.sflag [#allocation6], %s1553
        %s1555 = sand.u32 %s186, 1
        %s1556 = smul.addr %s1555, 256
        %s1557 = scalar_lea.vmem [#allocation12], %s1556
        // Predicated region
        $region65: #{tpu_custom_call.1} parent=47 // pred_check
          %p1558 = pneg %p196
        $region66: #{tpu_custom_call.1} parent=47 // pred_check_branch
          %1560 = sbr.rel (%p1558) target = $region68
        $region67: #{tpu_custom_call.1} parent=47 // pred_region
          %s1561 = smul.u32 32, %s26
          %s1563 = ssub.s32 4096, 4096
          %1564 = vsyncadd %s1554, %s1563
          %s1565 = smul.addr %s1561, 128
          %s1566 = scalar_lea.hbm %s7, %s1565
          %s1567 = sshll.u32 %s1557, 4
          %s1568 = int_to_ptr.vmem [resolvable:$true] %s1567
          %1573 = dma.vmem_to_hbm [thread:$0]  %s1568, 4096, %s1566, %s1554, 128, 128, 8
        $region68: #{tpu_custom_call.1} parent=47 // pred_fallthru
          _
      $region48: #{tpu_custom_call.1} parent=5 // pred_fallthru
        _
      %p1574 = scmp.le.s32.totalorder 2, %s21
      // Predicated region
      $region69: #{tpu_custom_call.1} parent=5 // pred_check
        %p1575 = pneg %p1574
      $region70: #{tpu_custom_call.1} parent=5 // pred_check_branch
        %1577 = sbr.rel (%p1575) target = $region72
      $region71: #{tpu_custom_call.1} parent=5 // pred_region
        %s1578 = ssub.s32 %s21, 2
        // Predicated region
        $region73: #{tpu_custom_call.1} parent=71 // pred_check
          %p1579 = pneg %p202
        $region74: #{tpu_custom_call.1} parent=71 // pred_check_branch
          %1581 = sbr.rel (%p1579) target = $region76
        $region75: #{tpu_custom_call.1} parent=71 // pred_region
          %s1582 = sand.u32 %s187, 1
          %s1583 = scalar_lea.sflag [#allocation6], %s1582
          %s1584 = sand.u32 %s187, 1
          %s1585 = smul.addr %s1584, 256
          %s1586 = scalar_lea.vmem [#allocation12], %s1585
          %1587 = dma.done %s1583, 4096
        $region76: #{tpu_custom_call.1} parent=71 // pred_fallthru
          _
      $region72: #{tpu_custom_call.1} parent=5 // pred_fallthru
        _
    $region6: #{tpu_custom_call.1} parent=1 // loop_footer
      %s25 = sadd.s32 1, %s21
    $region7: #{tpu_custom_call.1} parent=1 // loop_footer_branch
      %20 = sbr.rel target = $region3
    $region8: #{tpu_custom_call.1} parent=1 // loop_exit
      _
    %1588 = vsyncpa [#allocation5], 1
    %s1589 = scalar_lea.sflag [#allocation5], 1
    %1590 = vsyncpa %s1589, 1
    %1591 = vsyncpa [#allocation8], 1
    %1592 = vsyncpa [#allocation11], 1
    %1593 = vsyncpa [#allocation6], 1
    %s1594 = scalar_lea.sflag [#allocation6], 1
    %1595 = vsyncpa %s1594, 1

</llo_original>
